<compile_context>
chip_gen: v7x
topology: tpu7x:2x2x1
jax: 0.10.0
libtpu: 0.0.40
codegen_flags: <defaults>
</compile_context>

<pallas_src>
import functools

import jax
import jax.numpy as jnp
from jax import lax
from jax.experimental import pallas as pl
from jax.experimental.pallas import tpu as pltpu

BN_EPS = 1e-5


# ----------------------------------------------------------------------------
# Fused BasicBlock kernel
# ----------------------------------------------------------------------------
def _basic_block_kernel(*refs, stride, has_downsample, Ho, Wo, Cin, Cout):
    if has_downsample:
        (xph_ref, w1_ref, b1_ref, w2_ref, b2_ref, wsc_ref, bsc_ref,
         o_ref, mid_ref) = refs
    else:
        xph_ref, w1_ref, b1_ref, w2_ref, b2_ref, o_ref, mid_ref = refs

    s = stride
    M = Ho * Wo

    # ---- conv1 (3x3, stride s, pad 1) + BN1 + ReLU -------------------------
    # Build the (M, 9*Cin) im2col matrix in VMEM from contiguous slices of the
    # phase-decomposed padded input, then one bf16 MXU matmul.
    cols = []
    for ky in range(3):
        for kx in range(3):
            ph = (ky % s) * s + (kx % s)
            r0, c0 = ky // s, kx // s
            patch = xph_ref[0, ph, r0:r0 + Ho, c0:c0 + Wo, :]   # (Ho, Wo, Cin)
            cols.append(patch.reshape(M, Cin))
    a1 = jnp.concatenate(cols, axis=-1).astype(jnp.bfloat16)     # (M, 9*Cin)
    y1 = jnp.dot(a1, w1_ref[...], preferred_element_type=jnp.float32)
    y1 = jnp.maximum(y1 + b1_ref[...], 0.0)                      # f32 epilogue

    # ---- stage conv1 output into a zero-padded VMEM scratch (halo for conv2)
    mid_ref[...] = jnp.zeros_like(mid_ref)
    mid_ref[1:Ho + 1, 1:Wo + 1, :] = y1.reshape(Ho, Wo, Cout)

    # ---- conv2 (3x3, stride 1, pad 1) + BN2 (no ReLU yet) ------------------
    cols = []
    for ky in range(3):
        for kx in range(3):
            patch = mid_ref[ky:ky + Ho, kx:kx + Wo, :]           # (Ho, Wo, Cout)
            cols.append(patch.reshape(M, Cout))
    a2 = jnp.concatenate(cols, axis=-1).astype(jnp.bfloat16)     # (M, 9*Cout)
    y2 = jnp.dot(a2, w2_ref[...], preferred_element_type=jnp.float32)
    y2 = y2 + b2_ref[...]

    # ---- shortcut: identity, or fused 1x1 conv + BN (stride taken in-kernel)
    ph = (1 % s) * s + (1 % s)
    r0 = (1 - (1 % s)) // s
    xc = xph_ref[0, ph, r0:r0 + Ho, r0:r0 + Wo, :].reshape(M, Cin)
    if has_downsample:
        sc = jnp.dot(xc.astype(jnp.bfloat16), wsc_ref[...],
                     preferred_element_type=jnp.float32) + bsc_ref[...]
    else:
        sc = xc                                                   # Cin == Cout

    out = jnp.maximum(y2 + sc, 0.0)                               # residual + ReLU
    o_ref[...] = out.reshape(1, Ho, Wo, Cout).astype(o_ref.dtype)


# ----------------------------------------------------------------------------
# Wrapper
# ----------------------------------------------------------------------------
def _build_phases(x_nhwc, stride):
    """Pad by 1 and split into stride x stride phases -> (N, s*s, Hp, Wp, C)."""
    N, H, W, C = x_nhwc.shape
    Ho = (H - 1) // stride + 1
    Wo = (W - 1) // stride + 1
    xp = jnp.pad(x_nhwc, ((0, 0), (1, 1), (1, 1), (0, 0)))
    Hp = -(-(H + 2) // stride) * stride
    Wp = -(-(W + 2) // stride) * stride
    xp = jnp.pad(xp, ((0, 0), (0, Hp - (H + 2)), (0, Wp - (W + 2)), (0, 0)))
    phases = [xp[:, p::stride, q::stride, :]
              for p in range(stride) for q in range(stride)]
    xph = jnp.stack(phases, axis=1)            # (N, s*s, Hp//s, Wp//s, C)
    return xph, Ho, Wo


def basic_block_forward(params, x_nchw):
    """Fused Pallas BasicBlock forward.  x_nchw: (N, Cin, H, W) float32."""
    stride = params["stride"]
    x = jnp.transpose(x_nchw, (0, 2, 3, 1)).astype(jnp.float32)   # NHWC
    N, H, W, Cin = x.shape
    Cout = params["b1"].shape[-1]
    has_ds = "wsc" in params

    xph, Ho, Wo = _build_phases(x, stride)
    _, P, Hp, Wp, _ = xph.shape

    kernel = functools.partial(
        _basic_block_kernel, stride=stride, has_downsample=has_ds,
        Ho=Ho, Wo=Wo, Cin=Cin, Cout=Cout)

    in_specs = [
        pl.BlockSpec((1, P, Hp, Wp, Cin), lambda n: (n, 0, 0, 0, 0)),
        pl.BlockSpec((9 * Cin, Cout), lambda n: (0, 0)),
        pl.BlockSpec((1, Cout), lambda n: (0, 0)),
        pl.BlockSpec((9 * Cout, Cout), lambda n: (0, 0)),
        pl.BlockSpec((1, Cout), lambda n: (0, 0)),
    ]
    args = [xph, params["w1"], params["b1"], params["w2"], params["b2"]]
    if has_ds:
        in_specs += [pl.BlockSpec((Cin, Cout), lambda n: (0, 0)),
                     pl.BlockSpec((1, Cout), lambda n: (0, 0))]
        args += [params["wsc"], params["bsc"]]

    out = pl.pallas_call(
        kernel,
        out_shape=jax.ShapeDtypeStruct((N, Ho, Wo, Cout), jnp.float32),
        grid=(N,),
        in_specs=in_specs,
        out_specs=pl.BlockSpec((1, Ho, Wo, Cout), lambda n: (n, 0, 0, 0)),
        scratch_shapes=[pltpu.VMEM((Ho + 2, Wo + 2, Cout), jnp.float32)],
        compiler_params=pltpu.CompilerParams(
            dimension_semantics=("parallel",),
            vmem_limit_bytes=32 * 1024 * 1024),
    )(*args)
    return jnp.transpose(out, (0, 3, 1, 2))    # back to NCHW (PyTorch layout)


# ----------------------------------------------------------------------------
# Parameter construction (eval-mode BN folded; bf16 matmul weights)
# ----------------------------------------------------------------------------
def _bn_fold(c):
    # Fresh nn.BatchNorm2d, eval mode: gamma=1, beta=0, running_mean=0, var=1.
    gamma = jnp.ones((c,), jnp.float32)
    beta = jnp.zeros((c,), jnp.float32)
    mean = jnp.zeros((c,), jnp.float32)
    var = jnp.ones((c,), jnp.float32)
    scale = gamma / jnp.sqrt(var + BN_EPS)
    bias = beta - mean * scale
    return scale, bias


def make_basic_block_params(key, inplanes, planes, stride):
    k1, k2, k3 = jax.random.split(key, 3)
    w1 = jax.random.normal(k1, (3, 3, inplanes, planes), jnp.float32)
    w1 = w1 / jnp.sqrt(9.0 * inplanes)
    w2 = jax.random.normal(k2, (3, 3, planes, planes), jnp.float32)
    w2 = w2 / jnp.sqrt(9.0 * planes)
    s1, b1 = _bn_fold(planes)
    s2, b2 = _bn_fold(planes)

    p = {
        "stride": stride,
        # unfolded f32 weights / BN terms kept for the pure-JAX reference
        "w1_hwio": w1, "s1": s1, "w2_hwio": w2, "s2": s2,
        # kernel operands: BN scale folded into weight columns, cast to bf16
        "w1": (w1 * s1).reshape(9 * inplanes, planes).astype(jnp.bfloat16),
        "b1": b1.reshape(1, planes),
        "w2": (w2 * s2).reshape(9 * planes, planes).astype(jnp.bfloat16),
        "b2": b2.reshape(1, planes),
    }
    if stride != 1 or inplanes != planes:
        wsc = jax.random.normal(k3, (1, 1, inplanes, planes), jnp.float32)
        wsc = wsc / jnp.sqrt(float(inplanes))
        ssc, bsc = _bn_fold(planes)
        p["wsc_hwio"] = wsc
        p["ssc"] = ssc
        p["wsc"] = (wsc.reshape(inplanes, planes) * ssc).astype(jnp.bfloat16)
        p["bsc"] = bsc.reshape(1, planes)
    return p


# ----------------------------------------------------------------------------
# Pure-JAX f32 reference (mirrors torch BasicBlock.forward, eval-mode BN)
# ----------------------------------------------------------------------------
def basic_block_ref(params, x_nchw):
    s = params["stride"]
    x = jnp.transpose(x_nchw, (0, 2, 3, 1)).astype(jnp.float32)
    dn = ("NHWC", "HWIO", "NHWC")
    y = lax.conv_general_dilated(x, params["w1_hwio"], (s, s),
                                 ((1, 1), (1, 1)), dimension_numbers=dn)
    y = jnp.maximum(y * params["s1"] + params["b1"].reshape(-1), 0.0)
    z = lax.conv_general_dilated(y, params["w2_hwio"], (1, 1),
                                 ((1, 1), (1, 1)), dimension_numbers=dn)
    z = z * params["s2"] + params["b2"].reshape(-1)
    if "wsc_hwio" in params:
        sc = lax.conv_general_dilated(x, params["wsc_hwio"], (s, s),
                                      ((0, 0), (0, 0)), dimension_numbers=dn)
        sc = sc * params["ssc"] + params["bsc"].reshape(-1)
    else:
        sc = x
    out = jnp.maximum(z + sc, 0.0)
    return jnp.transpose(out, (0, 3, 1, 2))


# ----------------------------------------------------------------------------
if __name__ == "__main__":
    key = jax.random.PRNGKey(0)
    k_a, k_b, k_x = jax.random.split(key, 3)

    # Downsampling block: 64 -> 128 channels, stride 2 (1x1 conv shortcut).
    params_a = make_basic_block_params(k_a, 64, 128, stride=2)
    # Identity block: 128 -> 128 channels, stride 1 (identity shortcut).
    params_b = make_basic_block_params(k_b, 128, 128, stride=1)

    x = jax.random.normal(k_x, (2, 64, 16, 16), jnp.float32)   # NCHW like torch

    fwd_a = jax.jit(lambda t: basic_block_forward(params_a, t))
    fwd_b = jax.jit(lambda t: basic_block_forward(params_b, t))

    y_a = jax.block_until_ready(fwd_a(x))
    y_b = jax.block_until_ready(fwd_b(y_a))

    assert y_a.shape == (2, 128, 8, 8) and y_a.dtype == jnp.float32
    assert y_b.shape == (2, 128, 8, 8) and y_b.dtype == jnp.float32

    # Correctness vs. pure-JAX f32 reference (tolerance covers bf16 MXU inputs).
    ref_a = basic_block_ref(params_a, x)
    ref_b = basic_block_ref(params_b, y_a)
    err_a = float(jnp.max(jnp.abs(y_a - ref_a)))
    err_b = float(jnp.max(jnp.abs(y_b - ref_b)))
    assert err_a < 0.1 and err_b < 0.1, (err_a, err_b)

    print("KERNEL_OK")
</pallas_src>

<mosaic_0001>
module attributes {stable_mosaic.version = 11 : i64} {
  func.func @_basic_block_kernel(%arg0: i32, %arg1: memref<1x4x9x9x64xf32, #tpu.memory_space<vmem>>, %arg2: memref<576x128xbf16, #tpu.memory_space<vmem>>, %arg3: memref<1x128xf32, #tpu.memory_space<vmem>>, %arg4: memref<1152x128xbf16, #tpu.memory_space<vmem>>, %arg5: memref<1x128xf32, #tpu.memory_space<vmem>>, %arg6: memref<64x128xbf16, #tpu.memory_space<vmem>>, %arg7: memref<1x128xf32, #tpu.memory_space<vmem>>, %arg8: memref<1x8x8x128xf32, #tpu.memory_space<vmem>>, %arg9: memref<10x10x128xf32, #tpu.memory_space<vmem>>) attributes {dimension_semantics = [#tpu.dimension_semantics<parallel>], iteration_bounds = array<i64: 2>, scalar_prefetch = 0 : i64, scratch_operands = 1 : i64, tpu.core_type = #tpu.core_type<tc>, window_params = [{transform_indices = @transform_0, window_bounds = array<i64: 1, 4, 9, 9, 64>}, {pipeline_mode = #tpu.pipeline_mode<synchronous>, transform_indices = @transform_1, window_bounds = array<i64: 576, 128>}, {pipeline_mode = #tpu.pipeline_mode<synchronous>, transform_indices = @transform_2, window_bounds = array<i64: 1, 128>}, {pipeline_mode = #tpu.pipeline_mode<synchronous>, transform_indices = @transform_3, window_bounds = array<i64: 1152, 128>}, {pipeline_mode = #tpu.pipeline_mode<synchronous>, transform_indices = @transform_4, window_bounds = array<i64: 1, 128>}, {pipeline_mode = #tpu.pipeline_mode<synchronous>, transform_indices = @transform_5, window_bounds = array<i64: 64, 128>}, {pipeline_mode = #tpu.pipeline_mode<synchronous>, transform_indices = @transform_6, window_bounds = array<i64: 1, 128>}, {transform_indices = @transform_7, window_bounds = array<i64: 1, 8, 8, 128>}]} {
    %c0 = arith.constant 0 : index
    %c0_0 = arith.constant 0 : index
    %c0_1 = arith.constant 0 : index
    %c0_2 = arith.constant 0 : index
    %c0_3 = arith.constant 0 : index
    %0 = vector.load %arg1[%c0, %c0_0, %c0_1, %c0_2, %c0_3] : memref<1x4x9x9x64xf32, #tpu.memory_space<vmem>>, vector<1x1x8x8x64xf32>
    %1 = vector.shape_cast %0 : vector<1x1x8x8x64xf32> to vector<8x8x64xf32>
    %2 = vector.shape_cast %1 : vector<8x8x64xf32> to vector<64x64xf32>
    %c0_4 = arith.constant 0 : index
    %c1 = arith.constant 1 : index
    %c0_5 = arith.constant 0 : index
    %c0_6 = arith.constant 0 : index
    %c0_7 = arith.constant 0 : index
    %3 = vector.load %arg1[%c0_4, %c1, %c0_5, %c0_6, %c0_7] : memref<1x4x9x9x64xf32, #tpu.memory_space<vmem>>, vector<1x1x8x8x64xf32>
    %4 = vector.shape_cast %3 : vector<1x1x8x8x64xf32> to vector<8x8x64xf32>
    %5 = vector.shape_cast %4 : vector<8x8x64xf32> to vector<64x64xf32>
    %c0_8 = arith.constant 0 : index
    %c0_9 = arith.constant 0 : index
    %c0_10 = arith.constant 0 : index
    %c1_11 = arith.constant 1 : index
    %c0_12 = arith.constant 0 : index
    %6 = vector.load %arg1[%c0_8, %c0_9, %c0_10, %c1_11, %c0_12] : memref<1x4x9x9x64xf32, #tpu.memory_space<vmem>>, vector<1x1x8x8x64xf32>
    %7 = vector.shape_cast %6 : vector<1x1x8x8x64xf32> to vector<8x8x64xf32>
    %8 = vector.shape_cast %7 : vector<8x8x64xf32> to vector<64x64xf32>
    %c0_13 = arith.constant 0 : index
    %c2 = arith.constant 2 : index
    %c0_14 = arith.constant 0 : index
    %c0_15 = arith.constant 0 : index
    %c0_16 = arith.constant 0 : index
    %9 = vector.load %arg1[%c0_13, %c2, %c0_14, %c0_15, %c0_16] : memref<1x4x9x9x64xf32, #tpu.memory_space<vmem>>, vector<1x1x8x8x64xf32>
    %10 = vector.shape_cast %9 : vector<1x1x8x8x64xf32> to vector<8x8x64xf32>
    %11 = vector.shape_cast %10 : vector<8x8x64xf32> to vector<64x64xf32>
    %c0_17 = arith.constant 0 : index
    %c3 = arith.constant 3 : index
    %c0_18 = arith.constant 0 : index
    %c0_19 = arith.constant 0 : index
    %c0_20 = arith.constant 0 : index
    %12 = vector.load %arg1[%c0_17, %c3, %c0_18, %c0_19, %c0_20] : memref<1x4x9x9x64xf32, #tpu.memory_space<vmem>>, vector<1x1x8x8x64xf32>
    %13 = vector.shape_cast %12 : vector<1x1x8x8x64xf32> to vector<8x8x64xf32>
    %14 = vector.shape_cast %13 : vector<8x8x64xf32> to vector<64x64xf32>
    %c0_21 = arith.constant 0 : index
    %c2_22 = arith.constant 2 : index
    %c0_23 = arith.constant 0 : index
    %c1_24 = arith.constant 1 : index
    %c0_25 = arith.constant 0 : index
    %15 = vector.load %arg1[%c0_21, %c2_22, %c0_23, %c1_24, %c0_25] : memref<1x4x9x9x64xf32, #tpu.memory_space<vmem>>, vector<1x1x8x8x64xf32>
    %16 = vector.shape_cast %15 : vector<1x1x8x8x64xf32> to vector<8x8x64xf32>
    %17 = vector.shape_cast %16 : vector<8x8x64xf32> to vector<64x64xf32>
    %c0_26 = arith.constant 0 : index
    %c0_27 = arith.constant 0 : index
    %c1_28 = arith.constant 1 : index
    %c0_29 = arith.constant 0 : index
    %c0_30 = arith.constant 0 : index
    %18 = vector.load %arg1[%c0_26, %c0_27, %c1_28, %c0_29, %c0_30] : memref<1x4x9x9x64xf32, #tpu.memory_space<vmem>>, vector<1x1x8x8x64xf32>
    %19 = vector.shape_cast %18 : vector<1x1x8x8x64xf32> to vector<8x8x64xf32>
    %20 = vector.shape_cast %19 : vector<8x8x64xf32> to vector<64x64xf32>
    %c0_31 = arith.constant 0 : index
    %c1_32 = arith.constant 1 : index
    %c1_33 = arith.constant 1 : index
    %c0_34 = arith.constant 0 : index
    %c0_35 = arith.constant 0 : index
    %21 = vector.load %arg1[%c0_31, %c1_32, %c1_33, %c0_34, %c0_35] : memref<1x4x9x9x64xf32, #tpu.memory_space<vmem>>, vector<1x1x8x8x64xf32>
    %22 = vector.shape_cast %21 : vector<1x1x8x8x64xf32> to vector<8x8x64xf32>
    %23 = vector.shape_cast %22 : vector<8x8x64xf32> to vector<64x64xf32>
    %c0_36 = arith.constant 0 : index
    %c0_37 = arith.constant 0 : index
    %c1_38 = arith.constant 1 : index
    %c1_39 = arith.constant 1 : index
    %c0_40 = arith.constant 0 : index
    %24 = vector.load %arg1[%c0_36, %c0_37, %c1_38, %c1_39, %c0_40] : memref<1x4x9x9x64xf32, #tpu.memory_space<vmem>>, vector<1x1x8x8x64xf32>
    %25 = vector.shape_cast %24 : vector<1x1x8x8x64xf32> to vector<8x8x64xf32>
    %26 = vector.shape_cast %25 : vector<8x8x64xf32> to vector<64x64xf32>
    %27 = tpu.concatenate %2, %5, %8, %11, %14, %17, %20, %23, %26 in 1 : vector<64x64xf32>, vector<64x64xf32>, vector<64x64xf32>, vector<64x64xf32>, vector<64x64xf32>, vector<64x64xf32>, vector<64x64xf32>, vector<64x64xf32>, vector<64x64xf32> -> vector<64x576xf32>
    %28 = arith.truncf %27 : vector<64x576xf32> to vector<64x576xbf16>
    %c0_41 = arith.constant 0 : index
    %c0_42 = arith.constant 0 : index
    %29 = vector.load %arg2[%c0_41, %c0_42] : memref<576x128xbf16, #tpu.memory_space<vmem>>, vector<576x128xbf16>
    %cst = arith.constant dense<0.000000e+00> : vector<64x128xf32>
    %30 = tpu.matmul %28, %29, %cst {dimension_numbers = #tpu.dot_dimension_numbers<[1], [0], [0], [1], [0, 0, 1, 1], [], []>} : vector<64x576xbf16>, vector<576x128xbf16>, vector<64x128xf32> -> vector<64x128xf32>
    %c0_43 = arith.constant 0 : index
    %c0_44 = arith.constant 0 : index
    %31 = vector.load %arg3[%c0_43, %c0_44] : memref<1x128xf32, #tpu.memory_space<vmem>>, vector<1x128xf32>
    %32 = vector.broadcast %31 : vector<1x128xf32> to vector<64x128xf32>
    %33 = arith.addf %30, %32 : vector<64x128xf32>
    %cst_45 = arith.constant 0.000000e+00 : f32
    %34 = vector.broadcast %cst_45 : f32 to vector<64x128xf32>
    %35 = arith.maximumf %33, %34 : vector<64x128xf32>
    %cst_46 = arith.constant 0.000000e+00 : f32
    %36 = vector.broadcast %cst_46 : f32 to vector<10x10x128xf32>
    %c0_47 = arith.constant 0 : index
    %c0_48 = arith.constant 0 : index
    %c0_49 = arith.constant 0 : index
    %37 = vector.load %arg9[%c0_47, %c0_48, %c0_49] : memref<10x10x128xf32, #tpu.memory_space<vmem>>, vector<10x10x128xf32>
    tpu.vector_store %arg9[%c0_47, %c0_48, %c0_49], %36 {strides = array<i32>} : memref<10x10x128xf32, #tpu.memory_space<vmem>>, vector<10x10x128xf32>,
    %38 = vector.shape_cast %35 : vector<64x128xf32> to vector<8x8x128xf32>
    %c1_50 = arith.constant 1 : index
    %c1_51 = arith.constant 1 : index
    %c0_52 = arith.constant 0 : index
    %39 = vector.load %arg9[%c1_50, %c1_51, %c0_52] : memref<10x10x128xf32, #tpu.memory_space<vmem>>, vector<8x8x128xf32>
    tpu.vector_store %arg9[%c1_50, %c1_51, %c0_52], %38 {strides = array<i32>} : memref<10x10x128xf32, #tpu.memory_space<vmem>>, vector<8x8x128xf32>,
    %c0_53 = arith.constant 0 : index
    %c0_54 = arith.constant 0 : index
    %c0_55 = arith.constant 0 : index
    %40 = vector.load %arg9[%c0_53, %c0_54, %c0_55] : memref<10x10x128xf32, #tpu.memory_space<vmem>>, vector<8x8x128xf32>
    %41 = vector.shape_cast %40 : vector<8x8x128xf32> to vector<64x128xf32>
    %c0_56 = arith.constant 0 : index
    %c1_57 = arith.constant 1 : index
    %c0_58 = arith.constant 0 : index
    %42 = vector.load %arg9[%c0_56, %c1_57, %c0_58] : memref<10x10x128xf32, #tpu.memory_space<vmem>>, vector<8x8x128xf32>
    %43 = vector.shape_cast %42 : vector<8x8x128xf32> to vector<64x128xf32>
    %c0_59 = arith.constant 0 : index
    %c2_60 = arith.constant 2 : index
    %c0_61 = arith.constant 0 : index
    %44 = vector.load %arg9[%c0_59, %c2_60, %c0_61] : memref<10x10x128xf32, #tpu.memory_space<vmem>>, vector<8x8x128xf32>
    %45 = vector.shape_cast %44 : vector<8x8x128xf32> to vector<64x128xf32>
    %c1_62 = arith.constant 1 : index
    %c0_63 = arith.constant 0 : index
    %c0_64 = arith.constant 0 : index
    %46 = vector.load %arg9[%c1_62, %c0_63, %c0_64] : memref<10x10x128xf32, #tpu.memory_space<vmem>>, vector<8x8x128xf32>
    %47 = vector.shape_cast %46 : vector<8x8x128xf32> to vector<64x128xf32>
    %c1_65 = arith.constant 1 : index
    %c1_66 = arith.constant 1 : index
    %c0_67 = arith.constant 0 : index
    %48 = vector.load %arg9[%c1_65, %c1_66, %c0_67] : memref<10x10x128xf32, #tpu.memory_space<vmem>>, vector<8x8x128xf32>
    %49 = vector.shape_cast %48 : vector<8x8x128xf32> to vector<64x128xf32>
    %c1_68 = arith.constant 1 : index
    %c2_69 = arith.constant 2 : index
    %c0_70 = arith.constant 0 : index
    %50 = vector.load %arg9[%c1_68, %c2_69, %c0_70] : memref<10x10x128xf32, #tpu.memory_space<vmem>>, vector<8x8x128xf32>
    %51 = vector.shape_cast %50 : vector<8x8x128xf32> to vector<64x128xf32>
    %c2_71 = arith.constant 2 : index
    %c0_72 = arith.constant 0 : index
    %c0_73 = arith.constant 0 : index
    %52 = vector.load %arg9[%c2_71, %c0_72, %c0_73] : memref<10x10x128xf32, #tpu.memory_space<vmem>>, vector<8x8x128xf32>
    %53 = vector.shape_cast %52 : vector<8x8x128xf32> to vector<64x128xf32>
    %c2_74 = arith.constant 2 : index
    %c1_75 = arith.constant 1 : index
    %c0_76 = arith.constant 0 : index
    %54 = vector.load %arg9[%c2_74, %c1_75, %c0_76] : memref<10x10x128xf32, #tpu.memory_space<vmem>>, vector<8x8x128xf32>
    %55 = vector.shape_cast %54 : vector<8x8x128xf32> to vector<64x128xf32>
    %c2_77 = arith.constant 2 : index
    %c2_78 = arith.constant 2 : index
    %c0_79 = arith.constant 0 : index
    %56 = vector.load %arg9[%c2_77, %c2_78, %c0_79] : memref<10x10x128xf32, #tpu.memory_space<vmem>>, vector<8x8x128xf32>
    %57 = vector.shape_cast %56 : vector<8x8x128xf32> to vector<64x128xf32>
    %58 = tpu.concatenate %41, %43, %45, %47, %49, %51, %53, %55, %57 in 1 : vector<64x128xf32>, vector<64x128xf32>, vector<64x128xf32>, vector<64x128xf32>, vector<64x128xf32>, vector<64x128xf32>, vector<64x128xf32>, vector<64x128xf32>, vector<64x128xf32> -> vector<64x1152xf32>
    %59 = arith.truncf %58 : vector<64x1152xf32> to vector<64x1152xbf16>
    %c0_80 = arith.constant 0 : index
    %c0_81 = arith.constant 0 : index
    %60 = vector.load %arg4[%c0_80, %c0_81] : memref<1152x128xbf16, #tpu.memory_space<vmem>>, vector<1152x128xbf16>
    %cst_82 = arith.constant dense<0.000000e+00> : vector<64x128xf32>
    %61 = tpu.matmul %59, %60, %cst_82 {dimension_numbers = #tpu.dot_dimension_numbers<[1], [0], [0], [1], [0, 0, 1, 1], [], []>} : vector<64x1152xbf16>, vector<1152x128xbf16>, vector<64x128xf32> -> vector<64x128xf32>
    %c0_83 = arith.constant 0 : index
    %c0_84 = arith.constant 0 : index
    %62 = vector.load %arg5[%c0_83, %c0_84] : memref<1x128xf32, #tpu.memory_space<vmem>>, vector<1x128xf32>
    %63 = vector.broadcast %62 : vector<1x128xf32> to vector<64x128xf32>
    %64 = arith.addf %61, %63 : vector<64x128xf32>
    %c0_85 = arith.constant 0 : index
    %c3_86 = arith.constant 3 : index
    %c0_87 = arith.constant 0 : index
    %c0_88 = arith.constant 0 : index
    %c0_89 = arith.constant 0 : index
    %65 = vector.load %arg1[%c0_85, %c3_86, %c0_87, %c0_88, %c0_89] : memref<1x4x9x9x64xf32, #tpu.memory_space<vmem>>, vector<1x1x8x8x64xf32>
    %66 = vector.shape_cast %65 : vector<1x1x8x8x64xf32> to vector<8x8x64xf32>
    %67 = vector.shape_cast %66 : vector<8x8x64xf32> to vector<64x64xf32>
    %68 = arith.truncf %67 : vector<64x64xf32> to vector<64x64xbf16>
    %c0_90 = arith.constant 0 : index
    %c0_91 = arith.constant 0 : index
    %69 = vector.load %arg6[%c0_90, %c0_91] : memref<64x128xbf16, #tpu.memory_space<vmem>>, vector<64x128xbf16>
    %cst_92 = arith.constant dense<0.000000e+00> : vector<64x128xf32>
    %70 = tpu.matmul %68, %69, %cst_92 {dimension_numbers = #tpu.dot_dimension_numbers<[1], [0], [0], [1], [0, 0, 1, 1], [], []>} : vector<64x64xbf16>, vector<64x128xbf16>, vector<64x128xf32> -> vector<64x128xf32>
    %c0_93 = arith.constant 0 : index
    %c0_94 = arith.constant 0 : index
    %71 = vector.load %arg7[%c0_93, %c0_94] : memref<1x128xf32, #tpu.memory_space<vmem>>, vector<1x128xf32>
    %72 = vector.broadcast %71 : vector<1x128xf32> to vector<64x128xf32>
    %73 = arith.addf %70, %72 : vector<64x128xf32>
    %74 = arith.addf %64, %73 : vector<64x128xf32>
    %cst_95 = arith.constant 0.000000e+00 : f32
    %75 = vector.broadcast %cst_95 : f32 to vector<64x128xf32>
    %76 = arith.maximumf %74, %75 : vector<64x128xf32>
    %77 = vector.shape_cast %76 : vector<64x128xf32> to vector<1x8x8x128xf32>
    %c0_96 = arith.constant 0 : index
    %c0_97 = arith.constant 0 : index
    %c0_98 = arith.constant 0 : index
    %c0_99 = arith.constant 0 : index
    %78 = vector.load %arg8[%c0_96, %c0_97, %c0_98, %c0_99] : memref<1x8x8x128xf32, #tpu.memory_space<vmem>>, vector<1x8x8x128xf32>
    tpu.vector_store %arg8[%c0_96, %c0_97, %c0_98, %c0_99], %77 {strides = array<i32>} : memref<1x8x8x128xf32, #tpu.memory_space<vmem>>, vector<1x8x8x128xf32>,
    return
  }
  func.func @transform_0(%arg0: i32) -> (i32, i32, i32, i32, i32) {
    %c0_i32 = arith.constant 0 : i32
    %c0_i32_0 = arith.constant 0 : i32
    %c0_i32_1 = arith.constant 0 : i32
    %c0_i32_2 = arith.constant 0 : i32
    %c0_i32_3 = arith.constant 0 : i32
    return %arg0, %c0_i32, %c0_i32_0, %c0_i32_1, %c0_i32_2 : i32, i32, i32, i32, i32
  }
  func.func @transform_1(%arg0: i32) -> (i32, i32) {
    %c0_i32 = arith.constant 0 : i32
    %c0_i32_0 = arith.constant 0 : i32
    %c0_i32_1 = arith.constant 0 : i32
    return %c0_i32, %c0_i32_0 : i32, i32
  }
  func.func @transform_2(%arg0: i32) -> (i32, i32) {
    %c0_i32 = arith.constant 0 : i32
    %c0_i32_0 = arith.constant 0 : i32
    %c0_i32_1 = arith.constant 0 : i32
    return %c0_i32, %c0_i32_0 : i32, i32
  }
  func.func @transform_3(%arg0: i32) -> (i32, i32) {
    %c0_i32 = arith.constant 0 : i32
    %c0_i32_0 = arith.constant 0 : i32
    %c0_i32_1 = arith.constant 0 : i32
    return %c0_i32, %c0_i32_0 : i32, i32
  }
  func.func @transform_4(%arg0: i32) -> (i32, i32) {
    %c0_i32 = arith.constant 0 : i32
    %c0_i32_0 = arith.constant 0 : i32
    %c0_i32_1 = arith.constant 0 : i32
    return %c0_i32, %c0_i32_0 : i32, i32
  }
  func.func @transform_5(%arg0: i32) -> (i32, i32) {
    %c0_i32 = arith.constant 0 : i32
    %c0_i32_0 = arith.constant 0 : i32
    %c0_i32_1 = arith.constant 0 : i32
    return %c0_i32, %c0_i32_0 : i32, i32
  }
  func.func @transform_6(%arg0: i32) -> (i32, i32) {
    %c0_i32 = arith.constant 0 : i32
    %c0_i32_0 = arith.constant 0 : i32
    %c0_i32_1 = arith.constant 0 : i32
    return %c0_i32, %c0_i32_0 : i32, i32
  }
  func.func @transform_7(%arg0: i32) -> (i32, i32, i32, i32) {
    %c0_i32 = arith.constant 0 : i32
    %c0_i32_0 = arith.constant 0 : i32
    %c0_i32_1 = arith.constant 0 : i32
    %c0_i32_2 = arith.constant 0 : i32
    return %arg0, %c0_i32, %c0_i32_0, %c0_i32_1 : i32, i32, i32, i32
  }
}

</mosaic_0001>

<llo_original>
// kernel: _lambda_.1
$region0: #{_lambda_.1}
  #allocation0 [shape = 'u32[]', space=smem, size = 0x4, offset = 0x4, fixed_abs, tag = 'smem constant byte address 0x4 - core index']
  #allocation1 [shape = 'u32[144,128]{1,0:T(1,128)}', space=vmem, size = 0x12000, scoped, tag = 'internal scratch']
  #allocation2 [shape = 'f32[10,10,128]{2,1,0:T(8,128)}', space=vmem, size = 0x14000, scoped, tag = 'scratch operand']
  %s0 = inlined_call_operand.vmem [shape: f32[2,4,9,9,64], index: 0, kind: input, shape index: {}]
  %s1 = inlined_call_operand.vmem [shape: bf16[576,128], index: 1, kind: input, shape index: {}]
  %s2 = inlined_call_operand.vmem [shape: f32[1,128], index: 2, kind: input, shape index: {}, may-alias: {2,4,6}]
  %s3 = inlined_call_operand.vmem [shape: bf16[1152,128], index: 3, kind: input, shape index: {}]
  %s4 = inlined_call_operand.vmem [shape: f32[1,128], index: 4, kind: input, shape index: {}, may-alias: {2,4,6}]
  %s5 = inlined_call_operand.vmem [shape: bf16[64,128], index: 5, kind: input, shape index: {}]
  %s6 = inlined_call_operand.vmem [shape: f32[1,128], index: 6, kind: input, shape index: {}, may-alias: {2,4,6}]
  %s7 = inlined_call_operand.hbm [shape: f32[2,8,8,128], index: 7, kind: output, shape index: {}]
  %s8 = sld [smem:[#allocation0]]
  $region61: #{_lambda_.1} parent=0
    _
  %s10 = ssub.s32 1, %s8
  %s11 = scalar_select 0, %s10, %s8
  $region1: #{_lambda_.1} parent=0
    #allocation3 [shape = 'u8[65536]{0}', space=vmem, size = 0x10000, scoped, tag = 'output window, operand 0']
    #allocation4 [shape = 's32[2]{0}', space=sflag, size = 0x8, scoped, tag = 'scoped memory for _lambda_.1']
    %12 = vsyncpa [#allocation4], 0
    %s13 = scalar_lea.sflag [#allocation4], 1
    %14 = vsyncpa %s13, 0
    loop: start=0, step=1, limit=4
    $region2: #{_lambda_.1} parent=1 // loop_pre_header
      _
    $region3: #{_lambda_.1} parent=1 // loop_header
      %s16 = sphi 0, %s20
      %p17 = scmp.ge.s32.totalorder %s16, 4
      %s26 = sphi 0, %s28
      %s29 = sphi 0, %s26
      %s30 = sphi 0, %s29
      %s46 = sphi 0, %s30
      %s50 = sphi 0, %s50
      %s52 = sphi 0, %s50
      %s53 = sphi 0, %s52
      %s67 = sphi 0, %s53
      %s71 = sphi 0, %s71
      %s73 = sphi 0, %s71
      %s74 = sphi 0, %s73
      %s88 = sphi 0, %s74
      %s92 = sphi 0, %s92
      %s94 = sphi 0, %s92
      %s95 = sphi 0, %s94
      %s109 = sphi 0, %s95
      %s113 = sphi 0, %s113
      %s115 = sphi 0, %s113
      %s116 = sphi 0, %s115
      %s130 = sphi 0, %s116
      %s134 = sphi 0, %s134
      %s136 = sphi 0, %s134
      %s137 = sphi 0, %s136
      %s151 = sphi 0, %s137
      %s155 = sphi 0, %s155
      %s157 = sphi 0, %s155
      %s158 = sphi 0, %s157
      %s172 = sphi 0, %s158
      %s178 = sphi 0, %s180
      %s181 = sphi 0, %s178
      %s182 = sphi 0, %s181
      %s198 = sphi 0, %s182
    $region4: #{_lambda_.1} parent=1 // loop_header_branch
      %19 = sbr.rel (%p17) target = $region8
    $region5: #{_lambda_.1} parent=1 // loop_body
      %s21 = ssub.s32 %s16, 1
      %s22 = ssub.s32 %s16, 2
      %s23 = sadd.s32 %s16, 1
      %s24 = ssub.s32 %s16, %s23
      %p25 = scmp.eq.s32.totalorder %s24, 0
      %s27 = sadd.s32 %s26, 1
      %s28 = scalar_select %p25, %s26, %s27
      %p31 = pneg %p25
      %p32 = scmp.eq.s32.totalorder %s16, 1
      %p33 = por %p31, %p32
      %p34 = scmp.ne.s32.totalorder %s26, %s29
      %p35 = scmp.eq.s32.totalorder %s16, 0
      %p36 = por %p34, %p35
      %p37 = scmp.ne.s32.totalorder %s26, %s29
      %p38 = scmp.eq.s32.totalorder %s21, 1
      %p39 = por %p37, %p38
      %p40 = scmp.ne.s32.totalorder %s29, %s30
      %p41 = scmp.eq.s32.totalorder %s21, 0
      %p42 = por %p40, %p41
      %p43 = scmp.ne.s32.totalorder %s29, %s30
      %p44 = scmp.eq.s32.totalorder %s22, 1
      %p45 = por %p43, %p44
      %p47 = scmp.ne.s32.totalorder %s30, %s46
      %p48 = scmp.eq.s32.totalorder %s22, 0
      %p49 = por %p47, %p48
      %s51 = sadd.s32 %s50, 1
      %p54 = scmp.eq.s32.totalorder %s16, 1
      %p55 = scmp.ne.s32.totalorder %s50, %s52
      %p56 = scmp.eq.s32.totalorder %s16, 0
      %p57 = por %p55, %p56
      %p58 = scmp.ne.s32.totalorder %s50, %s52
      %p59 = scmp.eq.s32.totalorder %s21, 1
      %p60 = por %p58, %p59
      %p61 = scmp.ne.s32.totalorder %s52, %s53
      %p62 = scmp.eq.s32.totalorder %s21, 0
      %p63 = por %p61, %p62
      %p64 = scmp.ne.s32.totalorder %s52, %s53
      %p65 = scmp.eq.s32.totalorder %s22, 1
      %p66 = por %p64, %p65
      %p68 = scmp.ne.s32.totalorder %s53, %s67
      %p69 = scmp.eq.s32.totalorder %s22, 0
      %p70 = por %p68, %p69
      %s72 = sadd.s32 %s71, 1
      %p75 = scmp.eq.s32.totalorder %s16, 1
      %p76 = scmp.ne.s32.totalorder %s71, %s73
      %p77 = scmp.eq.s32.totalorder %s16, 0
      %p78 = por %p76, %p77
      %p79 = scmp.ne.s32.totalorder %s71, %s73
      %p80 = scmp.eq.s32.totalorder %s21, 1
      %p81 = por %p79, %p80
      %p82 = scmp.ne.s32.totalorder %s73, %s74
      %p83 = scmp.eq.s32.totalorder %s21, 0
      %p84 = por %p82, %p83
      %p85 = scmp.ne.s32.totalorder %s73, %s74
      %p86 = scmp.eq.s32.totalorder %s22, 1
      %p87 = por %p85, %p86
      %p89 = scmp.ne.s32.totalorder %s74, %s88
      %p90 = scmp.eq.s32.totalorder %s22, 0
      %p91 = por %p89, %p90
      %s93 = sadd.s32 %s92, 1
      %p96 = scmp.eq.s32.totalorder %s16, 1
      %p97 = scmp.ne.s32.totalorder %s92, %s94
      %p98 = scmp.eq.s32.totalorder %s16, 0
      %p99 = por %p97, %p98
      %p100 = scmp.ne.s32.totalorder %s92, %s94
      %p101 = scmp.eq.s32.totalorder %s21, 1
      %p102 = por %p100, %p101
      %p103 = scmp.ne.s32.totalorder %s94, %s95
      %p104 = scmp.eq.s32.totalorder %s21, 0
      %p105 = por %p103, %p104
      %p106 = scmp.ne.s32.totalorder %s94, %s95
      %p107 = scmp.eq.s32.totalorder %s22, 1
      %p108 = por %p106, %p107
      %p110 = scmp.ne.s32.totalorder %s95, %s109
      %p111 = scmp.eq.s32.totalorder %s22, 0
      %p112 = por %p110, %p111
      %s114 = sadd.s32 %s113, 1
      %p117 = scmp.eq.s32.totalorder %s16, 1
      %p118 = scmp.ne.s32.totalorder %s113, %s115
      %p119 = scmp.eq.s32.totalorder %s16, 0
      %p120 = por %p118, %p119
      %p121 = scmp.ne.s32.totalorder %s113, %s115
      %p122 = scmp.eq.s32.totalorder %s21, 1
      %p123 = por %p121, %p122
      %p124 = scmp.ne.s32.totalorder %s115, %s116
      %p125 = scmp.eq.s32.totalorder %s21, 0
      %p126 = por %p124, %p125
      %p127 = scmp.ne.s32.totalorder %s115, %s116
      %p128 = scmp.eq.s32.totalorder %s22, 1
      %p129 = por %p127, %p128
      %p131 = scmp.ne.s32.totalorder %s116, %s130
      %p132 = scmp.eq.s32.totalorder %s22, 0
      %p133 = por %p131, %p132
      %s135 = sadd.s32 %s134, 1
      %p138 = scmp.eq.s32.totalorder %s16, 1
      %p139 = scmp.ne.s32.totalorder %s134, %s136
      %p140 = scmp.eq.s32.totalorder %s16, 0
      %p141 = por %p139, %p140
      %p142 = scmp.ne.s32.totalorder %s134, %s136
      %p143 = scmp.eq.s32.totalorder %s21, 1
      %p144 = por %p142, %p143
      %p145 = scmp.ne.s32.totalorder %s136, %s137
      %p146 = scmp.eq.s32.totalorder %s21, 0
      %p147 = por %p145, %p146
      %p148 = scmp.ne.s32.totalorder %s136, %s137
      %p149 = scmp.eq.s32.totalorder %s22, 1
      %p150 = por %p148, %p149
      %p152 = scmp.ne.s32.totalorder %s137, %s151
      %p153 = scmp.eq.s32.totalorder %s22, 0
      %p154 = por %p152, %p153
      %s156 = sadd.s32 %s155, 1
      %p159 = scmp.eq.s32.totalorder %s16, 1
      %p160 = scmp.ne.s32.totalorder %s155, %s157
      %p161 = scmp.eq.s32.totalorder %s16, 0
      %p162 = por %p160, %p161
      %p163 = scmp.ne.s32.totalorder %s155, %s157
      %p164 = scmp.eq.s32.totalorder %s21, 1
      %p165 = por %p163, %p164
      %p166 = scmp.ne.s32.totalorder %s157, %s158
      %p167 = scmp.eq.s32.totalorder %s21, 0
      %p168 = por %p166, %p167
      %p169 = scmp.ne.s32.totalorder %s157, %s158
      %p170 = scmp.eq.s32.totalorder %s22, 1
      %p171 = por %p169, %p170
      %p173 = scmp.ne.s32.totalorder %s158, %s172
      %p174 = scmp.eq.s32.totalorder %s22, 0
      %p175 = por %p173, %p174
      %s176 = ssub.s32 %s16, %s23
      %p177 = scmp.eq.s32.totalorder %s176, 0
      %s179 = sadd.s32 %s178, 1
      %s180 = scalar_select %p177, %s178, %s179
      %p183 = pneg %p177
      %p184 = scmp.eq.s32.totalorder %s16, 1
      %p185 = por %p183, %p184
      %p186 = scmp.ne.s32.totalorder %s178, %s181
      %p187 = scmp.eq.s32.totalorder %s16, 0
      %p188 = por %p186, %p187
      %p189 = scmp.ne.s32.totalorder %s178, %s181
      %p190 = scmp.eq.s32.totalorder %s21, 1
      %p191 = por %p189, %p190
      %p192 = scmp.ne.s32.totalorder %s181, %s182
      %p193 = scmp.eq.s32.totalorder %s21, 0
      %p194 = por %p192, %p193
      %p195 = scmp.ne.s32.totalorder %s181, %s182
      %p196 = scmp.eq.s32.totalorder %s22, 1
      %p197 = por %p195, %p196
      %p199 = scmp.ne.s32.totalorder %s182, %s198
      %p200 = scmp.eq.s32.totalorder %s22, 0
      %p201 = por %p199, %p200
      %p202 = scmp.le.s32.totalorder 1, %s16
      %p203 = scmp.lt.s32.totalorder %s16, 3
      %p204 = pnand %p202, %p203
      %p205 = pneg %p204
      // Predicated region
      $region9: #{_lambda_.1} parent=5 // pred_check
        _
      $region10: #{_lambda_.1} parent=5 // pred_check_branch
        %207 = sbr.rel (%p204) target = $region12
      $region11: #{_lambda_.1} parent=5 // pred_region
        %s208 = ssub.s32 %s16, 1
        // Predicated region
        $region13: #{_lambda_.1} parent=11 // pred_check
          %p209 = pneg %p63
        $region14: #{_lambda_.1} parent=11 // pred_check_branch
          %211 = sbr.rel (%p209) target = $region16
        $region15: #{_lambda_.1} parent=11 // pred_region
          _
        $region16: #{_lambda_.1} parent=11 // pred_fallthru
          _
        // Predicated region
        $region17: #{_lambda_.1} parent=11 // pred_check
          %p212 = pneg %p84
        $region18: #{_lambda_.1} parent=11 // pred_check_branch
          %214 = sbr.rel (%p212) target = $region20
        $region19: #{_lambda_.1} parent=11 // pred_region
          _
        $region20: #{_lambda_.1} parent=11 // pred_fallthru
          _
        // Predicated region
        $region21: #{_lambda_.1} parent=11 // pred_check
          %p215 = pneg %p105
        $region22: #{_lambda_.1} parent=11 // pred_check_branch
          %217 = sbr.rel (%p215) target = $region24
        $region23: #{_lambda_.1} parent=11 // pred_region
          _
        $region24: #{_lambda_.1} parent=11 // pred_fallthru
          _
        // Predicated region
        $region25: #{_lambda_.1} parent=11 // pred_check
          %p218 = pneg %p126
        $region26: #{_lambda_.1} parent=11 // pred_check_branch
          %220 = sbr.rel (%p218) target = $region28
        $region27: #{_lambda_.1} parent=11 // pred_region
          _
        $region28: #{_lambda_.1} parent=11 // pred_fallthru
          _
        // Predicated region
        $region29: #{_lambda_.1} parent=11 // pred_check
          %p221 = pneg %p147
        $region30: #{_lambda_.1} parent=11 // pred_check_branch
          %223 = sbr.rel (%p221) target = $region32
        $region31: #{_lambda_.1} parent=11 // pred_region
          _
        $region32: #{_lambda_.1} parent=11 // pred_fallthru
          _
        // Predicated region
        $region33: #{_lambda_.1} parent=11 // pred_check
          %p224 = pneg %p168
        $region34: #{_lambda_.1} parent=11 // pred_check_branch
          %226 = sbr.rel (%p224) target = $region36
        $region35: #{_lambda_.1} parent=11 // pred_region
          _
        $region36: #{_lambda_.1} parent=11 // pred_fallthru
          _
      $region12: #{_lambda_.1} parent=5 // pred_fallthru
        _
      %p227 = scmp.lt.s32.totalorder %s16, 2
      // Predicated region
      $region37: #{_lambda_.1} parent=5 // pred_check
        %p228 = pneg %p227
      $region38: #{_lambda_.1} parent=5 // pred_check_branch
        %230 = sbr.rel (%p228) target = $region40
      $region39: #{_lambda_.1} parent=5 // pred_region
        // Predicated region
        $region41: #{_lambda_.1} parent=39 // pred_check
          %p231 = pneg %p36
        $region42: #{_lambda_.1} parent=39 // pred_check_branch
          %233 = sbr.rel (%p231) target = $region44
        $region43: #{_lambda_.1} parent=39 // pred_region
          %p234 = scmp.lt.s32.totalorder %s16, 1
          %s235 = scalar_select %p234, %s16, 1
          %s236 = smul.addr %s235, 72
          %s237 = smul.addr %s236, 8
          %s238 = scalar_lea.vmem %s0, %s237
        $region44: #{_lambda_.1} parent=39 // pred_fallthru
          _
      $region40: #{_lambda_.1} parent=5 // pred_fallthru
        _
      %p239 = scmp.le.s32.totalorder 1, %s16
      %p240 = scmp.lt.s32.totalorder %s16, 3
      %p241 = pnand %p239, %p240
      %p242 = pneg %p241
      // Predicated region
      $region45: #{_lambda_.1} parent=5 // pred_check
        _
      $region46: #{_lambda_.1} parent=5 // pred_check_branch
        %244 = sbr.rel (%p241) target = $region48
      $region47: #{_lambda_.1} parent=5 // pred_region
        %s245 = ssub.s32 %s16, 1
        %p246 = scmp.lt.s32.totalorder %s21, 1
        %s247 = scalar_select %p246, %s21, 1
        %s248 = smul.addr %s247, 72
        %s249 = smul.addr %s248, 8
        %s250 = scalar_lea.vmem %s0, %s249
        %p251 = pneg %p42
        %p252 = pneg %p39
        %p253 = pneg %p63
        %p254 = pneg %p60
        %p255 = pneg %p84
        %p256 = pneg %p81
        %p257 = pneg %p105
        %p258 = pneg %p102
        %p259 = pneg %p126
        %p260 = pneg %p123
        %p261 = pneg %p147
        %p262 = pneg %p144
        %p263 = pneg %p168
        %p264 = pneg %p165
        %p265 = pneg %p194
        %p266 = pneg %p191
        %s267 = sand.u32 %s181, 1
        %s268 = scalar_lea.sflag [#allocation4], %s267
        %s269 = sand.u32 %s181, 1
        %s270 = smul.addr %s269, 64
        %s271 = scalar_lea.vmem [#allocation3], %s270
        %p272 = scmp.lt.s32.totalorder %s21, 1
        %s273 = scalar_select %p272, %s21, 1
        %s274 = smul.addr %s273, 72
        %s275 = smul.addr %s274, 8
        %s276 = scalar_lea.vmem %s0, %s275
        %v278 = vld [vmem:[%s276] sm:$0xff]
        %v279 = vld [vmem:[%s276 + $0x10] sm:$0xff]
        %v280 = vld [vmem:[%s276 + $0x20] sm:$0xff]
        %v281 = vld [vmem:[%s276 + $0x30] sm:$0xff]
        %v282 = vld [vmem:[%s276 + $0x40] sm:$0xff]
        %v283 = vld [vmem:[%s276 + $0x50] sm:$0xff]
        %v284 = vld [vmem:[%s276 + $0x60] sm:$0xff]
        %v285 = vld [vmem:[%s276 + $0x70] sm:$0xff]
        %s286 = scalar_lea.vmem %s276, 144
        %v287 = vld [vmem:[%s286] sm:$0xff]
        %v288 = vld [vmem:[%s286 + $0x10] sm:$0xff]
        %v289 = vld [vmem:[%s286 + $0x20] sm:$0xff]
        %v290 = vld [vmem:[%s286 + $0x30] sm:$0xff]
        %v291 = vld [vmem:[%s286 + $0x40] sm:$0xff]
        %v292 = vld [vmem:[%s286 + $0x50] sm:$0xff]
        %v293 = vld [vmem:[%s286 + $0x60] sm:$0xff]
        %v294 = vld [vmem:[%s286 + $0x70] sm:$0xff]
        %v295 = vld [vmem:[%s276 + $0x1] sm:$0xff]
        %v296 = vld [vmem:[%s276 + $0x11] sm:$0xff]
        %v297 = vld [vmem:[%s276 + $0x21] sm:$0xff]
        %v298 = vld [vmem:[%s276 + $0x31] sm:$0xff]
        %v299 = vld [vmem:[%s276 + $0x41] sm:$0xff]
        %v300 = vld [vmem:[%s276 + $0x51] sm:$0xff]
        %v301 = vld [vmem:[%s276 + $0x61] sm:$0xff]
        %v302 = vld [vmem:[%s276 + $0x71] sm:$0xff]
        %s303 = scalar_lea.vmem %s276, 288
        %v304 = vld [vmem:[%s303] sm:$0xff]
        %v305 = vld [vmem:[%s303 + $0x10] sm:$0xff]
        %v306 = vld [vmem:[%s303 + $0x20] sm:$0xff]
        %v307 = vld [vmem:[%s303 + $0x30] sm:$0xff]
        %v308 = vld [vmem:[%s303 + $0x40] sm:$0xff]
        %v309 = vld [vmem:[%s303 + $0x50] sm:$0xff]
        %v310 = vld [vmem:[%s303 + $0x60] sm:$0xff]
        %v311 = vld [vmem:[%s303 + $0x70] sm:$0xff]
        %s312 = scalar_lea.vmem %s276, 432
        %v313 = vld [vmem:[%s312] sm:$0xff]
        %v314 = vld [vmem:[%s312 + $0x10] sm:$0xff]
        %v315 = vld [vmem:[%s312 + $0x20] sm:$0xff]
        %v316 = vld [vmem:[%s312 + $0x30] sm:$0xff]
        %v317 = vld [vmem:[%s312 + $0x40] sm:$0xff]
        %v318 = vld [vmem:[%s312 + $0x50] sm:$0xff]
        %v319 = vld [vmem:[%s312 + $0x60] sm:$0xff]
        %v320 = vld [vmem:[%s312 + $0x70] sm:$0xff]
        %v321 = vld [vmem:[%s303 + $0x1] sm:$0xff]
        %v322 = vld [vmem:[%s303 + $0x11] sm:$0xff]
        %v323 = vld [vmem:[%s303 + $0x21] sm:$0xff]
        %v324 = vld [vmem:[%s303 + $0x31] sm:$0xff]
        %v325 = vld [vmem:[%s303 + $0x41] sm:$0xff]
        %v326 = vld [vmem:[%s303 + $0x51] sm:$0xff]
        %v327 = vld [vmem:[%s303 + $0x61] sm:$0xff]
        %v328 = vld [vmem:[%s303 + $0x71] sm:$0xff]
        %s329 = scalar_lea.vmem %s276, 16
        %v330 = vld [vmem:[%s329] sm:$0xff]
        %v331 = vld [vmem:[%s329 + $0x10] sm:$0xff]
        %v332 = vld [vmem:[%s329 + $0x20] sm:$0xff]
        %v333 = vld [vmem:[%s329 + $0x30] sm:$0xff]
        %v334 = vld [vmem:[%s329 + $0x40] sm:$0xff]
        %v335 = vld [vmem:[%s329 + $0x50] sm:$0xff]
        %v336 = vld [vmem:[%s329 + $0x60] sm:$0xff]
        %v337 = vld [vmem:[%s329 + $0x70] sm:$0xff]
        %s338 = scalar_lea.vmem %s276, 160
        %v339 = vld [vmem:[%s338] sm:$0xff]
        %v340 = vld [vmem:[%s338 + $0x10] sm:$0xff]
        %v341 = vld [vmem:[%s338 + $0x20] sm:$0xff]
        %v342 = vld [vmem:[%s338 + $0x30] sm:$0xff]
        %v343 = vld [vmem:[%s338 + $0x40] sm:$0xff]
        %v344 = vld [vmem:[%s338 + $0x50] sm:$0xff]
        %v345 = vld [vmem:[%s338 + $0x60] sm:$0xff]
        %v346 = vld [vmem:[%s338 + $0x70] sm:$0xff]
        %v347 = vld [vmem:[%s329 + $0x1] sm:$0xff]
        %v348 = vld [vmem:[%s329 + $0x11] sm:$0xff]
        %v349 = vld [vmem:[%s329 + $0x21] sm:$0xff]
        %v350 = vld [vmem:[%s329 + $0x31] sm:$0xff]
        %v351 = vld [vmem:[%s329 + $0x41] sm:$0xff]
        %v352 = vld [vmem:[%s329 + $0x51] sm:$0xff]
        %v353 = vld [vmem:[%s329 + $0x61] sm:$0xff]
        %v354 = vld [vmem:[%s329 + $0x71] sm:$0xff]
        %363 = vrot.lane.b32.xlu0 %v287, 64
        %v364 = vpop.permute.xlu0 %363
        %365 = vrot.lane.b32.xlu0 %v288, 64
        %v366 = vpop.permute.xlu0 %365
        %367 = vrot.lane.b32.xlu0 %v289, 64
        %v368 = vpop.permute.xlu0 %367
        %369 = vrot.lane.b32.xlu0 %v290, 64
        %v370 = vpop.permute.xlu0 %369
        %371 = vrot.lane.b32.xlu0 %v291, 64
        %v372 = vpop.permute.xlu0 %371
        %373 = vrot.lane.b32.xlu0 %v292, 64
        %v374 = vpop.permute.xlu0 %373
        %375 = vrot.lane.b32.xlu0 %v293, 64
        %v376 = vpop.permute.xlu0 %375
        %377 = vrot.lane.b32.xlu0 %v294, 64
        %v378 = vpop.permute.xlu0 %377
        %395 = vrot.lane.b32.xlu0 %v304, 64
        %v396 = vpop.permute.xlu0 %395
        %397 = vrot.lane.b32.xlu0 %v305, 64
        %v398 = vpop.permute.xlu0 %397
        %399 = vrot.lane.b32.xlu0 %v306, 64
        %v400 = vpop.permute.xlu0 %399
        %401 = vrot.lane.b32.xlu0 %v307, 64
        %v402 = vpop.permute.xlu0 %401
        %403 = vrot.lane.b32.xlu0 %v308, 64
        %v404 = vpop.permute.xlu0 %403
        %405 = vrot.lane.b32.xlu0 %v309, 64
        %v406 = vpop.permute.xlu0 %405
        %407 = vrot.lane.b32.xlu0 %v310, 64
        %v408 = vpop.permute.xlu0 %407
        %409 = vrot.lane.b32.xlu0 %v311, 64
        %v410 = vpop.permute.xlu0 %409
        %427 = vrot.lane.b32.xlu0 %v321, 64
        %v428 = vpop.permute.xlu0 %427
        %429 = vrot.lane.b32.xlu0 %v322, 64
        %v430 = vpop.permute.xlu0 %429
        %431 = vrot.lane.b32.xlu0 %v323, 64
        %v432 = vpop.permute.xlu0 %431
        %433 = vrot.lane.b32.xlu0 %v324, 64
        %v434 = vpop.permute.xlu0 %433
        %435 = vrot.lane.b32.xlu0 %v325, 64
        %v436 = vpop.permute.xlu0 %435
        %437 = vrot.lane.b32.xlu0 %v326, 64
        %v438 = vpop.permute.xlu0 %437
        %439 = vrot.lane.b32.xlu0 %v327, 64
        %v440 = vpop.permute.xlu0 %439
        %441 = vrot.lane.b32.xlu0 %v328, 64
        %v442 = vpop.permute.xlu0 %441
        %459 = vrot.lane.b32.xlu0 %v339, 64
        %v460 = vpop.permute.xlu0 %459
        %461 = vrot.lane.b32.xlu0 %v340, 64
        %v462 = vpop.permute.xlu0 %461
        %463 = vrot.lane.b32.xlu0 %v341, 64
        %v464 = vpop.permute.xlu0 %463
        %465 = vrot.lane.b32.xlu0 %v342, 64
        %v466 = vpop.permute.xlu0 %465
        %467 = vrot.lane.b32.xlu0 %v343, 64
        %v468 = vpop.permute.xlu0 %467
        %469 = vrot.lane.b32.xlu0 %v344, 64
        %v470 = vpop.permute.xlu0 %469
        %471 = vrot.lane.b32.xlu0 %v345, 64
        %v472 = vpop.permute.xlu0 %471
        %473 = vrot.lane.b32.xlu0 %v346, 64
        %v474 = vpop.permute.xlu0 %473
        %vm483 = vcmask 523264
        %v484 = vsel %vm483, %v278, %v364
        %v485 = vsel %vm483, %v279, %v366
        %v486 = vsel %vm483, %v280, %v368
        %v487 = vsel %vm483, %v281, %v370
        %v488 = vsel %vm483, %v282, %v372
        %v489 = vsel %vm483, %v283, %v374
        %v490 = vsel %vm483, %v284, %v376
        %v491 = vsel %vm483, %v285, %v378
        %v492 = vsel %vm483, %v295, %v396
        %v493 = vsel %vm483, %v296, %v398
        %v494 = vsel %vm483, %v297, %v400
        %v495 = vsel %vm483, %v298, %v402
        %v496 = vsel %vm483, %v299, %v404
        %v497 = vsel %vm483, %v300, %v406
        %v498 = vsel %vm483, %v301, %v408
        %v499 = vsel %vm483, %v302, %v410
        %v500 = vsel %vm483, %v313, %v428
        %v501 = vsel %vm483, %v314, %v430
        %v502 = vsel %vm483, %v315, %v432
        %v503 = vsel %vm483, %v316, %v434
        %v504 = vsel %vm483, %v317, %v436
        %v505 = vsel %vm483, %v318, %v438
        %v506 = vsel %vm483, %v319, %v440
        %v507 = vsel %vm483, %v320, %v442
        %v508 = vsel %vm483, %v330, %v460
        %v509 = vsel %vm483, %v331, %v462
        %v510 = vsel %vm483, %v332, %v464
        %v511 = vsel %vm483, %v333, %v466
        %v512 = vsel %vm483, %v334, %v468
        %v513 = vsel %vm483, %v335, %v470
        %v514 = vsel %vm483, %v336, %v472
        %v515 = vsel %vm483, %v337, %v474
        %v516 = vpack.c.bf16 %v485, %v484
        %v517 = vpack.c.bf16 %v493, %v492
        %v518 = vpack.c.bf16 %v501, %v500
        %v519 = vpack.c.bf16 %v509, %v508
        %v520 = vpack.c.bf16 %v348, %v347
        %v521 = vpack.c.bf16 %v487, %v486
        %v522 = vpack.c.bf16 %v495, %v494
        %v523 = vpack.c.bf16 %v503, %v502
        %v524 = vpack.c.bf16 %v511, %v510
        %v525 = vpack.c.bf16 %v350, %v349
        %v526 = vpack.c.bf16 %v489, %v488
        %v527 = vpack.c.bf16 %v497, %v496
        %v528 = vpack.c.bf16 %v505, %v504
        %v529 = vpack.c.bf16 %v513, %v512
        %v530 = vpack.c.bf16 %v352, %v351
        %v531 = vpack.c.bf16 %v491, %v490
        %v532 = vpack.c.bf16 %v499, %v498
        %v533 = vpack.c.bf16 %v507, %v506
        %v534 = vpack.c.bf16 %v515, %v514
        %v535 = vpack.c.bf16 %v354, %v353
        %v536 = vld [vmem:[%s1] sm:$0xf]
        %v537 = vld [vmem:[%s1 + $0x4] sm:$0xf]
        %v538 = vld [vmem:[%s1 + $0x8] sm:$0xf]
        %v539 = vld [vmem:[%s1 + $0xc] sm:$0xf]
        %v540 = vld [vmem:[%s1 + $0x10] sm:$0xf]
        %v541 = vld [vmem:[%s1 + $0x14] sm:$0xf]
        %v542 = vld [vmem:[%s1 + $0x18] sm:$0xf]
        %v543 = vld [vmem:[%s1 + $0x1c] sm:$0xf]
        %v544 = vld [vmem:[%s1 + $0x20] sm:$0xf]
        %v545 = vld [vmem:[%s1 + $0x24] sm:$0xf]
        %v546 = vld [vmem:[%s1 + $0x28] sm:$0xf]
        %v547 = vld [vmem:[%s1 + $0x2c] sm:$0xf]
        %v548 = vld [vmem:[%s1 + $0x30] sm:$0xf]
        %v549 = vld [vmem:[%s1 + $0x34] sm:$0xf]
        %v550 = vld [vmem:[%s1 + $0x38] sm:$0xf]
        %v551 = vld [vmem:[%s1 + $0x3c] sm:$0xf]
        %v552 = vld [vmem:[%s1 + $0x40] sm:$0xf]
        %v553 = vld [vmem:[%s1 + $0x44] sm:$0xf]
        %v554 = vld [vmem:[%s1 + $0x48] sm:$0xf]
        %v555 = vld [vmem:[%s1 + $0x4c] sm:$0xf]
        %v556 = vld [vmem:[%s1 + $0x50] sm:$0xf]
        %v557 = vld [vmem:[%s1 + $0x54] sm:$0xf]
        %v558 = vld [vmem:[%s1 + $0x58] sm:$0xf]
        %v559 = vld [vmem:[%s1 + $0x5c] sm:$0xf]
        %v560 = vld [vmem:[%s1 + $0x60] sm:$0xf]
        %v561 = vld [vmem:[%s1 + $0x64] sm:$0xf]
        %v562 = vld [vmem:[%s1 + $0x68] sm:$0xf]
        %v563 = vld [vmem:[%s1 + $0x6c] sm:$0xf]
        %v564 = vld [vmem:[%s1 + $0x70] sm:$0xf]
        %v565 = vld [vmem:[%s1 + $0x74] sm:$0xf]
        %v566 = vld [vmem:[%s1 + $0x78] sm:$0xf]
        %v567 = vld [vmem:[%s1 + $0x7c] sm:$0xf]
        %v568 = vld [vmem:[%s1 + $0x80] sm:$0xf]
        %v569 = vld [vmem:[%s1 + $0x84] sm:$0xf]
        %v570 = vld [vmem:[%s1 + $0x88] sm:$0xf]
        %v571 = vld [vmem:[%s1 + $0x8c] sm:$0xf]
        %v572 = vld [vmem:[%s1 + $0x90] sm:$0xf]
        %v573 = vld [vmem:[%s1 + $0x94] sm:$0xf]
        %v574 = vld [vmem:[%s1 + $0x98] sm:$0xf]
        %v575 = vld [vmem:[%s1 + $0x9c] sm:$0xf]
        %v576 = vld [vmem:[%s1 + $0xa0] sm:$0xf]
        %v577 = vld [vmem:[%s1 + $0xa4] sm:$0xf]
        %v578 = vld [vmem:[%s1 + $0xa8] sm:$0xf]
        %v579 = vld [vmem:[%s1 + $0xac] sm:$0xf]
        %v580 = vld [vmem:[%s1 + $0xb0] sm:$0xf]
        %v581 = vld [vmem:[%s1 + $0xb4] sm:$0xf]
        %v582 = vld [vmem:[%s1 + $0xb8] sm:$0xf]
        %v583 = vld [vmem:[%s1 + $0xbc] sm:$0xf]
        %v584 = vld [vmem:[%s1 + $0xc0] sm:$0xf]
        %v585 = vld [vmem:[%s1 + $0xc4] sm:$0xf]
        %v586 = vld [vmem:[%s1 + $0xc8] sm:$0xf]
        %v587 = vld [vmem:[%s1 + $0xcc] sm:$0xf]
        %v588 = vld [vmem:[%s1 + $0xd0] sm:$0xf]
        %v589 = vld [vmem:[%s1 + $0xd4] sm:$0xf]
        %v590 = vld [vmem:[%s1 + $0xd8] sm:$0xf]
        %v591 = vld [vmem:[%s1 + $0xdc] sm:$0xf]
        %v592 = vld [vmem:[%s1 + $0xe0] sm:$0xf]
        %v593 = vld [vmem:[%s1 + $0xe4] sm:$0xf]
        %v594 = vld [vmem:[%s1 + $0xe8] sm:$0xf]
        %v595 = vld [vmem:[%s1 + $0xec] sm:$0xf]
        %v596 = vld [vmem:[%s1 + $0xf0] sm:$0xf]
        %v597 = vld [vmem:[%s1 + $0xf4] sm:$0xf]
        %v598 = vld [vmem:[%s1 + $0xf8] sm:$0xf]
        %v599 = vld [vmem:[%s1 + $0xfc] sm:$0xf]
        %v600 = vld [vmem:[%s1 + $0x100] sm:$0xf]
        %v601 = vld [vmem:[%s1 + $0x104] sm:$0xf]
        %v602 = vld [vmem:[%s1 + $0x108] sm:$0xf]
        %v603 = vld [vmem:[%s1 + $0x10c] sm:$0xf]
        %v604 = vld [vmem:[%s1 + $0x110] sm:$0xf]
        %v605 = vld [vmem:[%s1 + $0x114] sm:$0xf]
        %v606 = vld [vmem:[%s1 + $0x118] sm:$0xf]
        %v607 = vld [vmem:[%s1 + $0x11c] sm:$0xf]
        %v608 = vld [vmem:[%s2] sm:$0x1]
        %v610 = vlaneseq
        %v611 = vshrl.u32 %v610, 7
        %v612 = vsub.s32 0, %v611
        %v613 = vrot.slane %v608, %v612
        %v687 = vunpack.c.l.b16 %v536
        %v688 = vunpack.c.l.b16 %v537
        %v689 = vunpack.c.l.b16 %v538
        %v690 = vunpack.c.l.b16 %v539
        %v691 = vunpack.c.l.b16 %v540
        %v692 = vunpack.c.l.b16 %v541
        %v693 = vunpack.c.l.b16 %v542
        %v694 = vunpack.c.l.b16 %v543
        %v695 = vunpack.c.l.b16 %v544
        %v696 = vunpack.c.l.b16 %v545
        %v697 = vunpack.c.l.b16 %v546
        %v698 = vunpack.c.l.b16 %v547
        %v699 = vunpack.c.l.b16 %v548
        %v700 = vunpack.c.l.b16 %v549
        %v701 = vunpack.c.l.b16 %v550
        %v702 = vunpack.c.l.b16 %v551
        %v703 = vunpack.c.l.b16 %v552
        %v704 = vunpack.c.l.b16 %v553
        %v705 = vunpack.c.l.b16 %v554
        %v706 = vunpack.c.l.b16 %v555
        %v707 = vunpack.c.l.b16 %v556
        %v708 = vunpack.c.l.b16 %v557
        %v709 = vunpack.c.l.b16 %v558
        %v710 = vunpack.c.l.b16 %v559
        %v711 = vunpack.c.l.b16 %v560
        %v712 = vunpack.c.l.b16 %v561
        %v713 = vunpack.c.l.b16 %v562
        %v714 = vunpack.c.l.b16 %v563
        %v715 = vunpack.c.l.b16 %v564
        %v716 = vunpack.c.l.b16 %v565
        %v717 = vunpack.c.l.b16 %v566
        %v718 = vunpack.c.l.b16 %v567
        %v719 = vunpack.c.l.b16 %v568
        %v720 = vunpack.c.l.b16 %v569
        %v721 = vunpack.c.l.b16 %v570
        %v722 = vunpack.c.l.b16 %v571
        %v723 = vunpack.c.l.b16 %v572
        %v724 = vunpack.c.l.b16 %v573
        %v725 = vunpack.c.l.b16 %v574
        %v726 = vunpack.c.l.b16 %v575
        %v727 = vunpack.c.l.b16 %v576
        %v728 = vunpack.c.l.b16 %v577
        %v729 = vunpack.c.l.b16 %v578
        %v730 = vunpack.c.l.b16 %v579
        %v731 = vunpack.c.l.b16 %v580
        %v732 = vunpack.c.l.b16 %v581
        %v733 = vunpack.c.l.b16 %v582
        %v734 = vunpack.c.l.b16 %v583
        %v735 = vunpack.c.l.b16 %v584
        %v736 = vunpack.c.l.b16 %v585
        %v737 = vunpack.c.l.b16 %v586
        %v738 = vunpack.c.l.b16 %v587
        %v739 = vunpack.c.l.b16 %v588
        %v740 = vunpack.c.l.b16 %v589
        %v741 = vunpack.c.l.b16 %v590
        %v742 = vunpack.c.l.b16 %v591
        %v743 = vunpack.c.l.b16 %v592
        %v744 = vunpack.c.l.b16 %v593
        %v745 = vunpack.c.l.b16 %v594
        %v746 = vunpack.c.l.b16 %v595
        %v747 = vunpack.c.l.b16 %v596
        %v748 = vunpack.c.l.b16 %v597
        %v749 = vunpack.c.l.b16 %v598
        %v750 = vunpack.c.l.b16 %v599
        %v751 = vunpack.c.l.b16 %v600
        %v752 = vunpack.c.l.b16 %v601
        %v753 = vunpack.c.l.b16 %v602
        %v754 = vunpack.c.l.b16 %v603
        %v755 = vunpack.c.l.b16 %v604
        %v756 = vunpack.c.l.b16 %v605
        %v757 = vunpack.c.l.b16 %v606
        %v758 = vunpack.c.l.b16 %v607
        %v759 = vpack.c.b16 %v688, %v687
        %v760 = vpack.c.b16 %v690, %v689
        %v761 = vpack.c.b16 %v692, %v691
        %v762 = vpack.c.b16 %v694, %v693
        %v763 = vpack.c.b16 %v696, %v695
        %v764 = vpack.c.b16 %v698, %v697
        %v765 = vpack.c.b16 %v700, %v699
        %v766 = vpack.c.b16 %v702, %v701
        %v767 = vpack.c.b16 %v704, %v703
        %v768 = vpack.c.b16 %v706, %v705
        %v769 = vpack.c.b16 %v708, %v707
        %v770 = vpack.c.b16 %v710, %v709
        %v771 = vpack.c.b16 %v712, %v711
        %v772 = vpack.c.b16 %v714, %v713
        %v773 = vpack.c.b16 %v716, %v715
        %v774 = vpack.c.b16 %v718, %v717
        %v775 = vpack.c.b16 %v720, %v719
        %v776 = vpack.c.b16 %v722, %v721
        %v777 = vpack.c.b16 %v724, %v723
        %v778 = vpack.c.b16 %v726, %v725
        %v779 = vpack.c.b16 %v728, %v727
        %v780 = vpack.c.b16 %v730, %v729
        %v781 = vpack.c.b16 %v732, %v731
        %v782 = vpack.c.b16 %v734, %v733
        %v783 = vpack.c.b16 %v736, %v735
        %v784 = vpack.c.b16 %v738, %v737
        %v785 = vpack.c.b16 %v740, %v739
        %v786 = vpack.c.b16 %v742, %v741
        %v787 = vpack.c.b16 %v744, %v743
        %v788 = vpack.c.b16 %v746, %v745
        %v789 = vpack.c.b16 %v748, %v747
        %v790 = vpack.c.b16 %v750, %v749
        %v791 = vpack.c.b16 %v752, %v751
        %v792 = vpack.c.b16 %v754, %v753
        %v793 = vpack.c.b16 %v756, %v755
        %v794 = vpack.c.b16 %v758, %v757
        %v832 = vsel %vm483, %v520, 0
        %v835 = vsel %vm483, %v525, 0
        %v838 = vsel %vm483, %v530, 0
        %v841 = vsel %vm483, %v535, 0
        %843 = vmatprep.subr.bf16.mxu0 0
        %844 = vmatpush1.bf16.msra.mxu0 %v759
        %845 = vmatprep.subr.bf16.mxu0 0
        %846 = vmatpush1.bf16.msra.mxu0 %v760
        %847 = vmatprep.subr.bf16.mxu0 0
        %848 = vmatpush1.bf16.msra.mxu0 %v761
        %849 = vmatprep.subr.bf16.mxu0 0
        %850 = vmatpush1.bf16.msra.mxu0 %v762
        %851 = vmatprep.subr.bf16.mxu0 0
        %852 = vmatpush1.bf16.msra.mxu0 %v763
        %853 = vmatprep.subr.bf16.mxu0 0
        %854 = vmatpush1.bf16.msra.mxu0 %v764
        %855 = vmatprep.subr.bf16.mxu0 0
        %856 = vmatpush1.bf16.msra.mxu0 %v765
        %857 = vmatprep.subr.bf16.mxu0 0
        %858 = vmatpush1.bf16.msra.mxu0 %v766
        %859 = vmatprep.subr.bf16.mxu0 0
        %860 = vmatpush1.bf16.msra.mxu0 %v767
        %861 = vmatprep.subr.bf16.mxu0 0
        %862 = vmatpush1.bf16.msra.mxu0 %v768
        %863 = vmatprep.subr.bf16.mxu0 0
        %864 = vmatpush1.bf16.msra.mxu0 %v769
        %865 = vmatprep.subr.bf16.mxu0 0
        %866 = vmatpush1.bf16.msra.mxu0 %v770
        %867 = vmatprep.subr.bf16.mxu0 0
        %868 = vmatpush1.bf16.msra.mxu0 %v771
        %869 = vmatprep.subr.bf16.mxu0 0
        %870 = vmatpush1.bf16.msra.mxu0 %v772
        %871 = vmatprep.subr.bf16.mxu0 0
        %872 = vmatpush1.bf16.msra.mxu0 %v773
        %873 = vmatprep.subr.bf16.mxu0 0
        %874 = vmatpush1.bf16.msra.mxu0 %v774
        %875 = vmatprep.mubr.bf16.mxu0 %v517
        %876 = vmatmul.mubr.bf16.gmra.mrb[0].mxu0 %v516
        %v877 = vpop.f32.mrb[0].mxu0
        %v878 = vadd.f32 %v613, %v877
        %v879 = vpop.f32.mrb[0].mxu0
        %v880 = vpop.f32.mrb[0].mxu0
        %v881 = vadd.f32 %v613, %v880
        %v882 = vpop.f32.mrb[0].mxu0
        %883 = vmatprep.mubr.bf16.mxu0 %v522
        %884 = vmatmul.mubr.bf16.gmra.mrb[0].mxu0 %v521
        %v885 = vpop.f32.mrb[0].mxu0
        %v886 = vadd.f32 %v613, %v885
        %v887 = vpop.f32.mrb[0].mxu0
        %v888 = vpop.f32.mrb[0].mxu0
        %v889 = vadd.f32 %v613, %v888
        %v890 = vpop.f32.mrb[0].mxu0
        %891 = vmatprep.mubr.bf16.mxu0 %v527
        %892 = vmatmul.mubr.bf16.gmra.mrb[0].mxu0 %v526
        %v893 = vpop.f32.mrb[0].mxu0
        %v894 = vadd.f32 %v613, %v893
        %v895 = vpop.f32.mrb[0].mxu0
        %v896 = vpop.f32.mrb[0].mxu0
        %v897 = vadd.f32 %v613, %v896
        %v898 = vpop.f32.mrb[0].mxu0
        %899 = vmatprep.mubr.bf16.mxu0 %v532
        %900 = vmatmul.mubr.bf16.gmra.mrb[0].mxu0 %v531
        %v901 = vpop.f32.mrb[0].mxu0
        %v902 = vadd.f32 %v613, %v901
        %v903 = vpop.f32.mrb[0].mxu0
        %v904 = vpop.f32.mrb[0].mxu0
        %v905 = vadd.f32 %v613, %v904
        %v906 = vpop.f32.mrb[0].mxu0
        %907 = vdwg.mxu0
        %908 = vmatprep.subr.bf16.mxu0 0
        %909 = vmatpush1.bf16.msra.mxu0 %v775
        %910 = vmatprep.subr.bf16.mxu0 0
        %911 = vmatpush1.bf16.msra.mxu0 %v776
        %912 = vmatprep.subr.bf16.mxu0 0
        %913 = vmatpush1.bf16.msra.mxu0 %v777
        %914 = vmatprep.subr.bf16.mxu0 0
        %915 = vmatpush1.bf16.msra.mxu0 %v778
        %916 = vmatprep.subr.bf16.mxu0 0
        %917 = vmatpush1.bf16.msra.mxu0 %v779
        %918 = vmatprep.subr.bf16.mxu0 0
        %919 = vmatpush1.bf16.msra.mxu0 %v780
        %920 = vmatprep.subr.bf16.mxu0 0
        %921 = vmatpush1.bf16.msra.mxu0 %v781
        %922 = vmatprep.subr.bf16.mxu0 0
        %923 = vmatpush1.bf16.msra.mxu0 %v782
        %924 = vmatprep.subr.bf16.mxu0 0
        %925 = vmatpush1.bf16.msra.mxu0 %v783
        %926 = vmatprep.subr.bf16.mxu0 0
        %927 = vmatpush1.bf16.msra.mxu0 %v784
        %928 = vmatprep.subr.bf16.mxu0 0
        %929 = vmatpush1.bf16.msra.mxu0 %v785
        %930 = vmatprep.subr.bf16.mxu0 0
        %931 = vmatpush1.bf16.msra.mxu0 %v786
        %932 = vmatprep.subr.bf16.mxu0 0
        %933 = vmatpush1.bf16.msra.mxu0 %v787
        %934 = vmatprep.subr.bf16.mxu0 0
        %935 = vmatpush1.bf16.msra.mxu0 %v788
        %936 = vmatprep.subr.bf16.mxu0 0
        %937 = vmatpush1.bf16.msra.mxu0 %v789
        %938 = vmatprep.subr.bf16.mxu0 0
        %939 = vmatpush1.bf16.msra.mxu0 %v790
        %940 = vmatprep.mubr.bf16.mxu0 %v519
        %941 = vmatmul.mubr.bf16.gmra.mrb[0].mxu0 %v518
        %v942 = vpop.f32.mrb[0].mxu0
        %v943 = vadd.f32 %v878, %v942
        %v944 = vpop.f32.mrb[0].mxu0
        %v945 = vpop.f32.mrb[0].mxu0
        %v946 = vadd.f32 %v881, %v945
        %v947 = vpop.f32.mrb[0].mxu0
        %948 = vmatprep.mubr.bf16.mxu0 %v524
        %949 = vmatmul.mubr.bf16.gmra.mrb[0].mxu0 %v523
        %v950 = vpop.f32.mrb[0].mxu0
        %v951 = vadd.f32 %v886, %v950
        %v952 = vpop.f32.mrb[0].mxu0
        %v953 = vpop.f32.mrb[0].mxu0
        %v954 = vadd.f32 %v889, %v953
        %v955 = vpop.f32.mrb[0].mxu0
        %956 = vmatprep.mubr.bf16.mxu0 %v529
        %957 = vmatmul.mubr.bf16.gmra.mrb[0].mxu0 %v528
        %v958 = vpop.f32.mrb[0].mxu0
        %v959 = vadd.f32 %v894, %v958
        %v960 = vpop.f32.mrb[0].mxu0
        %v961 = vpop.f32.mrb[0].mxu0
        %v962 = vadd.f32 %v897, %v961
        %v963 = vpop.f32.mrb[0].mxu0
        %964 = vmatprep.mubr.bf16.mxu0 %v534
        %965 = vmatmul.mubr.bf16.gmra.mrb[0].mxu0 %v533
        %v966 = vpop.f32.mrb[0].mxu0
        %v967 = vadd.f32 %v902, %v966
        %v968 = vpop.f32.mrb[0].mxu0
        %v969 = vpop.f32.mrb[0].mxu0
        %v970 = vadd.f32 %v905, %v969
        %v971 = vpop.f32.mrb[0].mxu0
        %972 = vdwg.mxu0
        %973 = vmatprep.subr.bf16.mxu0 0
        %974 = vmatpush1.bf16.msra.mxu0 %v791
        %975 = vmatprep.subr.bf16.mxu0 0
        %976 = vmatpush1.bf16.msra.mxu0 %v792
        %977 = vmatprep.subr.bf16.mxu0 0
        %978 = vmatpush1.bf16.msra.mxu0 %v793
        %979 = vmatprep.subr.bf16.mxu0 0
        %980 = vmatpush1.bf16.msra.mxu0 %v794
        %981 = vmatprep.subr.bf16.mxu0 0
        %982 = vmatpush1.bf16.msra.mxu0 0
        %983 = vmatprep.subr.bf16.mxu0 0
        %984 = vmatpush1.bf16.msra.mxu0 0
        %985 = vmatprep.subr.bf16.mxu0 0
        %986 = vmatpush1.bf16.msra.mxu0 0
        %987 = vmatprep.subr.bf16.mxu0 0
        %988 = vmatpush1.bf16.msra.mxu0 0
        %989 = vmatprep.subr.bf16.mxu0 0
        %990 = vmatpush1.bf16.msra.mxu0 0
        %991 = vmatprep.subr.bf16.mxu0 0
        %992 = vmatpush1.bf16.msra.mxu0 0
        %993 = vmatprep.subr.bf16.mxu0 0
        %994 = vmatpush1.bf16.msra.mxu0 0
        %995 = vmatprep.subr.bf16.mxu0 0
        %996 = vmatpush1.bf16.msra.mxu0 0
        %997 = vmatprep.subr.bf16.mxu0 0
        %998 = vmatpush1.bf16.msra.mxu0 0
        %999 = vmatprep.subr.bf16.mxu0 0
        %1000 = vmatpush1.bf16.msra.mxu0 0
        %1001 = vmatprep.subr.bf16.mxu0 0
        %1002 = vmatpush1.bf16.msra.mxu0 0
        %1003 = vmatprep.subr.bf16.mxu0 0
        %1004 = vmatpush1.bf16.msra.mxu0 0
        %1005 = vmatprep.mubr.bf16.mxu0 0
        %1006 = vmatmul.mubr.bf16.gmra.mrb[0].mxu0 %v832
        %v1007 = vpop.f32.mrb[0].mxu0
        %v1008 = vadd.f32 %v943, %v1007
        %v1009 = vpop.f32.mrb[0].mxu0
        %v1010 = vpop.f32.mrb[0].mxu0
        %v1011 = vadd.f32 %v946, %v1010
        %v1012 = vpop.f32.mrb[0].mxu0
        %1013 = vmatprep.mubr.bf16.mxu0 0
        %1014 = vmatmul.mubr.bf16.gmra.mrb[0].mxu0 %v835
        %v1015 = vpop.f32.mrb[0].mxu0
        %v1016 = vadd.f32 %v951, %v1015
        %v1017 = vpop.f32.mrb[0].mxu0
        %v1018 = vpop.f32.mrb[0].mxu0
        %v1019 = vadd.f32 %v954, %v1018
        %v1020 = vpop.f32.mrb[0].mxu0
        %1021 = vmatprep.mubr.bf16.mxu0 0
        %1022 = vmatmul.mubr.bf16.gmra.mrb[0].mxu0 %v838
        %v1023 = vpop.f32.mrb[0].mxu0
        %v1024 = vadd.f32 %v959, %v1023
        %v1025 = vpop.f32.mrb[0].mxu0
        %v1026 = vpop.f32.mrb[0].mxu0
        %v1027 = vadd.f32 %v962, %v1026
        %v1028 = vpop.f32.mrb[0].mxu0
        %1029 = vmatprep.mubr.bf16.mxu0 0
        %1030 = vmatmul.mubr.bf16.gmra.mrb[0].mxu0 %v841
        %v1031 = vpop.f32.mrb[0].mxu0
        %v1032 = vadd.f32 %v967, %v1031
        %v1033 = vpop.f32.mrb[0].mxu0
        %v1034 = vpop.f32.mrb[0].mxu0
        %v1035 = vadd.f32 %v970, %v1034
        %v1036 = vpop.f32.mrb[0].mxu0
        %1037 = vdwg.mxu0
        %v1038 = vmax.f32 %v1008, 0.0
        %v1039 = vmax.f32 %v1011, 0.0
        %v1040 = vmax.f32 %v1016, 0.0
        %v1041 = vmax.f32 %v1019, 0.0
        %v1042 = vmax.f32 %v1024, 0.0
        %v1043 = vmax.f32 %v1027, 0.0
        %v1044 = vmax.f32 %v1032, 0.0
        %v1045 = vmax.f32 %v1035, 0.0
        %1046 = vst [vmem:[#allocation2] sm:$0xff] 0.0
        %1047 = vst [vmem:[#allocation2 + $0x8] sm:$0x3] 0.0
        %1048 = vst [vmem:[#allocation2 + $0x10] sm:$0xff] 0.0
        %1049 = vst [vmem:[#allocation2 + $0x18] sm:$0x3] 0.0
        %1050 = vst [vmem:[#allocation2 + $0x20] sm:$0xff] 0.0
        %1051 = vst [vmem:[#allocation2 + $0x28] sm:$0x3] 0.0
        %1052 = vst [vmem:[#allocation2 + $0x30] sm:$0xff] 0.0
        %1053 = vst [vmem:[#allocation2 + $0x38] sm:$0x3] 0.0
        %1054 = vst [vmem:[#allocation2 + $0x40] sm:$0xff] 0.0
        %1055 = vst [vmem:[#allocation2 + $0x48] sm:$0x3] 0.0
        %1056 = vst [vmem:[#allocation2 + $0x50] sm:$0xff] 0.0
        %1057 = vst [vmem:[#allocation2 + $0x58] sm:$0x3] 0.0
        %1058 = vst [vmem:[#allocation2 + $0x60] sm:$0xff] 0.0
        %1059 = vst [vmem:[#allocation2 + $0x68] sm:$0x3] 0.0
        %1060 = vst [vmem:[#allocation2 + $0x70] sm:$0xff] 0.0
        %1061 = vst [vmem:[#allocation2 + $0x78] sm:$0x3] 0.0
        %1062 = vst [vmem:[#allocation2 + $0x80] sm:$0xff] 0.0
        %1063 = vst [vmem:[#allocation2 + $0x88] sm:$0x3] 0.0
        %1064 = vst [vmem:[#allocation2 + $0x90] sm:$0xff] 0.0
        %1065 = vst [vmem:[#allocation2 + $0x98] sm:$0x3] 0.0
        %s1066 = scalar_lea.vmem [#allocation2], 16
        %1067 = vst [vmem:[%s1066 + $0x1] sm:$0xff] %v1038
        %1068 = vst [vmem:[%s1066 + $0x11] sm:$0xff] %v1039
        %1069 = vst [vmem:[%s1066 + $0x21] sm:$0xff] %v1040
        %1070 = vst [vmem:[%s1066 + $0x31] sm:$0xff] %v1041
        %1071 = vst [vmem:[%s1066 + $0x41] sm:$0xff] %v1042
        %1072 = vst [vmem:[%s1066 + $0x51] sm:$0xff] %v1043
        %1073 = vst [vmem:[%s1066 + $0x61] sm:$0xff] %v1044
        %1074 = vst [vmem:[%s1066 + $0x71] sm:$0xff] %v1045
        %v1075 = vld [vmem:[#allocation2] sm:$0xff]
        %v1076 = vld [vmem:[#allocation2 + $0x10] sm:$0xff]
        %v1077 = vld [vmem:[#allocation2 + $0x20] sm:$0xff]
        %v1078 = vld [vmem:[#allocation2 + $0x30] sm:$0xff]
        %v1079 = vld [vmem:[#allocation2 + $0x40] sm:$0xff]
        %v1080 = vld [vmem:[#allocation2 + $0x50] sm:$0xff]
        %v1081 = vld [vmem:[#allocation2 + $0x60] sm:$0xff]
        %v1082 = vld [vmem:[#allocation2 + $0x70] sm:$0xff]
        %v1083 = vld [vmem:[#allocation2 + $0x1] sm:$0xff]
        %v1084 = vld [vmem:[#allocation2 + $0x11] sm:$0xff]
        %v1085 = vld [vmem:[#allocation2 + $0x21] sm:$0xff]
        %v1086 = vld [vmem:[#allocation2 + $0x31] sm:$0xff]
        %v1087 = vld [vmem:[#allocation2 + $0x41] sm:$0xff]
        %v1088 = vld [vmem:[#allocation2 + $0x51] sm:$0xff]
        %v1089 = vld [vmem:[#allocation2 + $0x61] sm:$0xff]
        %v1090 = vld [vmem:[#allocation2 + $0x71] sm:$0xff]
        %v1091 = vld [vmem:[#allocation2 + $0x2] sm:$0xff]
        %v1092 = vld [vmem:[#allocation2 + $0x12] sm:$0xff]
        %v1093 = vld [vmem:[#allocation2 + $0x22] sm:$0xff]
        %v1094 = vld [vmem:[#allocation2 + $0x32] sm:$0xff]
        %v1095 = vld [vmem:[#allocation2 + $0x42] sm:$0xff]
        %v1096 = vld [vmem:[#allocation2 + $0x52] sm:$0xff]
        %v1097 = vld [vmem:[#allocation2 + $0x62] sm:$0xff]
        %v1098 = vld [vmem:[#allocation2 + $0x72] sm:$0xff]
        %v1099 = vld [vmem:[%s1066] sm:$0xff]
        %v1100 = vld [vmem:[%s1066 + $0x10] sm:$0xff]
        %v1101 = vld [vmem:[%s1066 + $0x20] sm:$0xff]
        %v1102 = vld [vmem:[%s1066 + $0x30] sm:$0xff]
        %v1103 = vld [vmem:[%s1066 + $0x40] sm:$0xff]
        %v1104 = vld [vmem:[%s1066 + $0x50] sm:$0xff]
        %v1105 = vld [vmem:[%s1066 + $0x60] sm:$0xff]
        %v1106 = vld [vmem:[%s1066 + $0x70] sm:$0xff]
        %v1107 = vld [vmem:[%s1066 + $0x1] sm:$0xff]
        %v1108 = vld [vmem:[%s1066 + $0x11] sm:$0xff]
        %v1109 = vld [vmem:[%s1066 + $0x21] sm:$0xff]
        %v1110 = vld [vmem:[%s1066 + $0x31] sm:$0xff]
        %v1111 = vld [vmem:[%s1066 + $0x41] sm:$0xff]
        %v1112 = vld [vmem:[%s1066 + $0x51] sm:$0xff]
        %v1113 = vld [vmem:[%s1066 + $0x61] sm:$0xff]
        %v1114 = vld [vmem:[%s1066 + $0x71] sm:$0xff]
        %v1115 = vld [vmem:[%s1066 + $0x2] sm:$0xff]
        %v1116 = vld [vmem:[%s1066 + $0x12] sm:$0xff]
        %v1117 = vld [vmem:[%s1066 + $0x22] sm:$0xff]
        %v1118 = vld [vmem:[%s1066 + $0x32] sm:$0xff]
        %v1119 = vld [vmem:[%s1066 + $0x42] sm:$0xff]
        %v1120 = vld [vmem:[%s1066 + $0x52] sm:$0xff]
        %v1121 = vld [vmem:[%s1066 + $0x62] sm:$0xff]
        %v1122 = vld [vmem:[%s1066 + $0x72] sm:$0xff]
        %s1123 = scalar_lea.vmem [#allocation2], 32
        %v1124 = vld [vmem:[%s1123] sm:$0xff]
        %v1125 = vld [vmem:[%s1123 + $0x10] sm:$0xff]
        %v1126 = vld [vmem:[%s1123 + $0x20] sm:$0xff]
        %v1127 = vld [vmem:[%s1123 + $0x30] sm:$0xff]
        %v1128 = vld [vmem:[%s1123 + $0x40] sm:$0xff]
        %v1129 = vld [vmem:[%s1123 + $0x50] sm:$0xff]
        %v1130 = vld [vmem:[%s1123 + $0x60] sm:$0xff]
        %v1131 = vld [vmem:[%s1123 + $0x70] sm:$0xff]
        %v1132 = vld [vmem:[%s1123 + $0x1] sm:$0xff]
        %v1133 = vld [vmem:[%s1123 + $0x11] sm:$0xff]
        %v1134 = vld [vmem:[%s1123 + $0x21] sm:$0xff]
        %v1135 = vld [vmem:[%s1123 + $0x31] sm:$0xff]
        %v1136 = vld [vmem:[%s1123 + $0x41] sm:$0xff]
        %v1137 = vld [vmem:[%s1123 + $0x51] sm:$0xff]
        %v1138 = vld [vmem:[%s1123 + $0x61] sm:$0xff]
        %v1139 = vld [vmem:[%s1123 + $0x71] sm:$0xff]
        %v1140 = vld [vmem:[%s1123 + $0x2] sm:$0xff]
        %v1141 = vld [vmem:[%s1123 + $0x12] sm:$0xff]
        %v1142 = vld [vmem:[%s1123 + $0x22] sm:$0xff]
        %v1143 = vld [vmem:[%s1123 + $0x32] sm:$0xff]
        %v1144 = vld [vmem:[%s1123 + $0x42] sm:$0xff]
        %v1145 = vld [vmem:[%s1123 + $0x52] sm:$0xff]
        %v1146 = vld [vmem:[%s1123 + $0x62] sm:$0xff]
        %v1147 = vld [vmem:[%s1123 + $0x72] sm:$0xff]
        %v1148 = vpack.c.bf16 %v1076, %v1075
        %v1149 = vpack.c.bf16 %v1084, %v1083
        %v1150 = vpack.c.bf16 %v1092, %v1091
        %v1151 = vpack.c.bf16 %v1100, %v1099
        %v1152 = vpack.c.bf16 %v1108, %v1107
        %v1153 = vpack.c.bf16 %v1116, %v1115
        %v1154 = vpack.c.bf16 %v1125, %v1124
        %v1155 = vpack.c.bf16 %v1133, %v1132
        %v1156 = vpack.c.bf16 %v1141, %v1140
        %v1157 = vpack.c.bf16 %v1078, %v1077
        %v1158 = vpack.c.bf16 %v1086, %v1085
        %v1159 = vpack.c.bf16 %v1094, %v1093
        %v1160 = vpack.c.bf16 %v1102, %v1101
        %v1161 = vpack.c.bf16 %v1110, %v1109
        %v1162 = vpack.c.bf16 %v1118, %v1117
        %v1163 = vpack.c.bf16 %v1127, %v1126
        %v1164 = vpack.c.bf16 %v1135, %v1134
        %v1165 = vpack.c.bf16 %v1143, %v1142
        %v1166 = vpack.c.bf16 %v1080, %v1079
        %v1167 = vpack.c.bf16 %v1088, %v1087
        %v1168 = vpack.c.bf16 %v1096, %v1095
        %v1169 = vpack.c.bf16 %v1104, %v1103
        %v1170 = vpack.c.bf16 %v1112, %v1111
        %v1171 = vpack.c.bf16 %v1120, %v1119
        %v1172 = vpack.c.bf16 %v1129, %v1128
        %v1173 = vpack.c.bf16 %v1137, %v1136
        %v1174 = vpack.c.bf16 %v1145, %v1144
        %v1175 = vpack.c.bf16 %v1082, %v1081
        %v1176 = vpack.c.bf16 %v1090, %v1089
        %v1177 = vpack.c.bf16 %v1098, %v1097
        %v1178 = vpack.c.bf16 %v1106, %v1105
        %v1179 = vpack.c.bf16 %v1114, %v1113
        %v1180 = vpack.c.bf16 %v1122, %v1121
        %v1181 = vpack.c.bf16 %v1131, %v1130
        %v1182 = vpack.c.bf16 %v1139, %v1138
        %v1183 = vpack.c.bf16 %v1147, %v1146
        %v1184 = vld [vmem:[%s3] sm:$0xf]
        %v1185 = vld [vmem:[%s3 + $0x4] sm:$0xf]
        %v1186 = vld [vmem:[%s3 + $0x8] sm:$0xf]
        %v1187 = vld [vmem:[%s3 + $0xc] sm:$0xf]
        %v1188 = vld [vmem:[%s3 + $0x10] sm:$0xf]
        %v1189 = vld [vmem:[%s3 + $0x14] sm:$0xf]
        %v1190 = vld [vmem:[%s3 + $0x18] sm:$0xf]
        %v1191 = vld [vmem:[%s3 + $0x1c] sm:$0xf]
        %v1192 = vld [vmem:[%s3 + $0x20] sm:$0xf]
        %v1193 = vld [vmem:[%s3 + $0x24] sm:$0xf]
        %v1194 = vld [vmem:[%s3 + $0x28] sm:$0xf]
        %v1195 = vld [vmem:[%s3 + $0x2c] sm:$0xf]
        %v1196 = vld [vmem:[%s3 + $0x30] sm:$0xf]
        %v1197 = vld [vmem:[%s3 + $0x34] sm:$0xf]
        %v1198 = vld [vmem:[%s3 + $0x38] sm:$0xf]
        %v1199 = vld [vmem:[%s3 + $0x3c] sm:$0xf]
        %v1200 = vld [vmem:[%s3 + $0x40] sm:$0xf]
        %v1201 = vld [vmem:[%s3 + $0x44] sm:$0xf]
        %v1202 = vld [vmem:[%s3 + $0x48] sm:$0xf]
        %v1203 = vld [vmem:[%s3 + $0x4c] sm:$0xf]
        %v1204 = vld [vmem:[%s3 + $0x50] sm:$0xf]
        %v1205 = vld [vmem:[%s3 + $0x54] sm:$0xf]
        %v1206 = vld [vmem:[%s3 + $0x58] sm:$0xf]
        %v1207 = vld [vmem:[%s3 + $0x5c] sm:$0xf]
        %v1208 = vld [vmem:[%s3 + $0x60] sm:$0xf]
        %v1209 = vld [vmem:[%s3 + $0x64] sm:$0xf]
        %v1210 = vld [vmem:[%s3 + $0x68] sm:$0xf]
        %v1211 = vld [vmem:[%s3 + $0x6c] sm:$0xf]
        %v1212 = vld [vmem:[%s3 + $0x70] sm:$0xf]
        %v1213 = vld [vmem:[%s3 + $0x74] sm:$0xf]
        %v1214 = vld [vmem:[%s3 + $0x78] sm:$0xf]
        %v1215 = vld [vmem:[%s3 + $0x7c] sm:$0xf]
        %v1216 = vld [vmem:[%s3 + $0x80] sm:$0xf]
        %v1217 = vld [vmem:[%s3 + $0x84] sm:$0xf]
        %v1218 = vld [vmem:[%s3 + $0x88] sm:$0xf]
        %v1219 = vld [vmem:[%s3 + $0x8c] sm:$0xf]
        %v1220 = vld [vmem:[%s3 + $0x90] sm:$0xf]
        %v1221 = vld [vmem:[%s3 + $0x94] sm:$0xf]
        %v1222 = vld [vmem:[%s3 + $0x98] sm:$0xf]
        %v1223 = vld [vmem:[%s3 + $0x9c] sm:$0xf]
        %v1224 = vld [vmem:[%s3 + $0xa0] sm:$0xf]
        %v1225 = vld [vmem:[%s3 + $0xa4] sm:$0xf]
        %v1226 = vld [vmem:[%s3 + $0xa8] sm:$0xf]
        %v1227 = vld [vmem:[%s3 + $0xac] sm:$0xf]
        %v1228 = vld [vmem:[%s3 + $0xb0] sm:$0xf]
        %v1229 = vld [vmem:[%s3 + $0xb4] sm:$0xf]
        %v1230 = vld [vmem:[%s3 + $0xb8] sm:$0xf]
        %v1231 = vld [vmem:[%s3 + $0xbc] sm:$0xf]
        %v1232 = vld [vmem:[%s3 + $0xc0] sm:$0xf]
        %v1233 = vld [vmem:[%s3 + $0xc4] sm:$0xf]
        %v1234 = vld [vmem:[%s3 + $0xc8] sm:$0xf]
        %v1235 = vld [vmem:[%s3 + $0xcc] sm:$0xf]
        %v1236 = vld [vmem:[%s3 + $0xd0] sm:$0xf]
        %v1237 = vld [vmem:[%s3 + $0xd4] sm:$0xf]
        %v1238 = vld [vmem:[%s3 + $0xd8] sm:$0xf]
        %v1239 = vld [vmem:[%s3 + $0xdc] sm:$0xf]
        %v1240 = vld [vmem:[%s3 + $0xe0] sm:$0xf]
        %v1241 = vld [vmem:[%s3 + $0xe4] sm:$0xf]
        %v1242 = vld [vmem:[%s3 + $0xe8] sm:$0xf]
        %v1243 = vld [vmem:[%s3 + $0xec] sm:$0xf]
        %v1244 = vld [vmem:[%s3 + $0xf0] sm:$0xf]
        %v1245 = vld [vmem:[%s3 + $0xf4] sm:$0xf]
        %v1246 = vld [vmem:[%s3 + $0xf8] sm:$0xf]
        %v1247 = vld [vmem:[%s3 + $0xfc] sm:$0xf]
        %v1248 = vld [vmem:[%s3 + $0x100] sm:$0xf]
        %v1249 = vld [vmem:[%s3 + $0x104] sm:$0xf]
        %v1250 = vld [vmem:[%s3 + $0x108] sm:$0xf]
        %v1251 = vld [vmem:[%s3 + $0x10c] sm:$0xf]
        %v1252 = vld [vmem:[%s3 + $0x110] sm:$0xf]
        %v1253 = vld [vmem:[%s3 + $0x114] sm:$0xf]
        %v1254 = vld [vmem:[%s3 + $0x118] sm:$0xf]
        %v1255 = vld [vmem:[%s3 + $0x11c] sm:$0xf]
        %v1256 = vld [vmem:[%s3 + $0x120] sm:$0xf]
        %v1257 = vld [vmem:[%s3 + $0x124] sm:$0xf]
        %v1258 = vld [vmem:[%s3 + $0x128] sm:$0xf]
        %v1259 = vld [vmem:[%s3 + $0x12c] sm:$0xf]
        %v1260 = vld [vmem:[%s3 + $0x130] sm:$0xf]
        %v1261 = vld [vmem:[%s3 + $0x134] sm:$0xf]
        %v1262 = vld [vmem:[%s3 + $0x138] sm:$0xf]
        %v1263 = vld [vmem:[%s3 + $0x13c] sm:$0xf]
        %v1264 = vld [vmem:[%s3 + $0x140] sm:$0xf]
        %v1265 = vld [vmem:[%s3 + $0x144] sm:$0xf]
        %v1266 = vld [vmem:[%s3 + $0x148] sm:$0xf]
        %v1267 = vld [vmem:[%s3 + $0x14c] sm:$0xf]
        %v1268 = vld [vmem:[%s3 + $0x150] sm:$0xf]
        %v1269 = vld [vmem:[%s3 + $0x154] sm:$0xf]
        %v1270 = vld [vmem:[%s3 + $0x158] sm:$0xf]
        %v1271 = vld [vmem:[%s3 + $0x15c] sm:$0xf]
        %v1272 = vld [vmem:[%s3 + $0x160] sm:$0xf]
        %v1273 = vld [vmem:[%s3 + $0x164] sm:$0xf]
        %v1274 = vld [vmem:[%s3 + $0x168] sm:$0xf]
        %v1275 = vld [vmem:[%s3 + $0x16c] sm:$0xf]
        %v1276 = vld [vmem:[%s3 + $0x170] sm:$0xf]
        %v1277 = vld [vmem:[%s3 + $0x174] sm:$0xf]
        %v1278 = vld [vmem:[%s3 + $0x178] sm:$0xf]
        %v1279 = vld [vmem:[%s3 + $0x17c] sm:$0xf]
        %v1280 = vld [vmem:[%s3 + $0x180] sm:$0xf]
        %v1281 = vld [vmem:[%s3 + $0x184] sm:$0xf]
        %v1282 = vld [vmem:[%s3 + $0x188] sm:$0xf]
        %v1283 = vld [vmem:[%s3 + $0x18c] sm:$0xf]
        %v1284 = vld [vmem:[%s3 + $0x190] sm:$0xf]
        %v1285 = vld [vmem:[%s3 + $0x194] sm:$0xf]
        %v1286 = vld [vmem:[%s3 + $0x198] sm:$0xf]
        %v1287 = vld [vmem:[%s3 + $0x19c] sm:$0xf]
        %v1288 = vld [vmem:[%s3 + $0x1a0] sm:$0xf]
        %v1289 = vld [vmem:[%s3 + $0x1a4] sm:$0xf]
        %v1290 = vld [vmem:[%s3 + $0x1a8] sm:$0xf]
        %v1291 = vld [vmem:[%s3 + $0x1ac] sm:$0xf]
        %v1292 = vld [vmem:[%s3 + $0x1b0] sm:$0xf]
        %v1293 = vld [vmem:[%s3 + $0x1b4] sm:$0xf]
        %v1294 = vld [vmem:[%s3 + $0x1b8] sm:$0xf]
        %v1295 = vld [vmem:[%s3 + $0x1bc] sm:$0xf]
        %v1296 = vld [vmem:[%s3 + $0x1c0] sm:$0xf]
        %v1297 = vld [vmem:[%s3 + $0x1c4] sm:$0xf]
        %v1298 = vld [vmem:[%s3 + $0x1c8] sm:$0xf]
        %v1299 = vld [vmem:[%s3 + $0x1cc] sm:$0xf]
        %v1300 = vld [vmem:[%s3 + $0x1d0] sm:$0xf]
        %v1301 = vld [vmem:[%s3 + $0x1d4] sm:$0xf]
        %v1302 = vld [vmem:[%s3 + $0x1d8] sm:$0xf]
        %v1303 = vld [vmem:[%s3 + $0x1dc] sm:$0xf]
        %v1304 = vld [vmem:[%s3 + $0x1e0] sm:$0xf]
        %v1305 = vld [vmem:[%s3 + $0x1e4] sm:$0xf]
        %v1306 = vld [vmem:[%s3 + $0x1e8] sm:$0xf]
        %v1307 = vld [vmem:[%s3 + $0x1ec] sm:$0xf]
        %v1308 = vld [vmem:[%s3 + $0x1f0] sm:$0xf]
        %v1309 = vld [vmem:[%s3 + $0x1f4] sm:$0xf]
        %v1310 = vld [vmem:[%s3 + $0x1f8] sm:$0xf]
        %v1311 = vld [vmem:[%s3 + $0x1fc] sm:$0xf]
        %v1312 = vld [vmem:[%s3 + $0x200] sm:$0xf]
        %v1313 = vld [vmem:[%s3 + $0x204] sm:$0xf]
        %v1314 = vld [vmem:[%s3 + $0x208] sm:$0xf]
        %v1315 = vld [vmem:[%s3 + $0x20c] sm:$0xf]
        %v1316 = vld [vmem:[%s3 + $0x210] sm:$0xf]
        %v1317 = vld [vmem:[%s3 + $0x214] sm:$0xf]
        %v1318 = vld [vmem:[%s3 + $0x218] sm:$0xf]
        %v1319 = vld [vmem:[%s3 + $0x21c] sm:$0xf]
        %v1320 = vld [vmem:[%s3 + $0x220] sm:$0xf]
        %v1321 = vld [vmem:[%s3 + $0x224] sm:$0xf]
        %v1322 = vld [vmem:[%s3 + $0x228] sm:$0xf]
        %v1323 = vld [vmem:[%s3 + $0x22c] sm:$0xf]
        %v1324 = vld [vmem:[%s3 + $0x230] sm:$0xf]
        %v1325 = vld [vmem:[%s3 + $0x234] sm:$0xf]
        %v1326 = vld [vmem:[%s3 + $0x238] sm:$0xf]
        %v1327 = vld [vmem:[%s3 + $0x23c] sm:$0xf]
        %v1328 = vld [vmem:[%s4] sm:$0x1]
        %v1330 = vlaneseq
        %v1331 = vshrl.u32 %v1330, 7
        %v1332 = vsub.s32 0, %v1331
        %v1333 = vrot.slane %v1328, %v1332
        %v1479 = vunpack.c.l.b16 %v1184
        %v1480 = vunpack.c.l.b16 %v1185
        %v1481 = vunpack.c.l.b16 %v1186
        %v1482 = vunpack.c.l.b16 %v1187
        %v1483 = vunpack.c.l.b16 %v1188
        %v1484 = vunpack.c.l.b16 %v1189
        %v1485 = vunpack.c.l.b16 %v1190
        %v1486 = vunpack.c.l.b16 %v1191
        %v1487 = vunpack.c.l.b16 %v1192
        %v1488 = vunpack.c.l.b16 %v1193
        %v1489 = vunpack.c.l.b16 %v1194
        %v1490 = vunpack.c.l.b16 %v1195
        %v1491 = vunpack.c.l.b16 %v1196
        %v1492 = vunpack.c.l.b16 %v1197
        %v1493 = vunpack.c.l.b16 %v1198
        %v1494 = vunpack.c.l.b16 %v1199
        %v1495 = vunpack.c.l.b16 %v1200
        %v1496 = vunpack.c.l.b16 %v1201
        %v1497 = vunpack.c.l.b16 %v1202
        %v1498 = vunpack.c.l.b16 %v1203
        %v1499 = vunpack.c.l.b16 %v1204
        %v1500 = vunpack.c.l.b16 %v1205
        %v1501 = vunpack.c.l.b16 %v1206
        %v1502 = vunpack.c.l.b16 %v1207
        %v1503 = vunpack.c.l.b16 %v1208
        %v1504 = vunpack.c.l.b16 %v1209
        %v1505 = vunpack.c.l.b16 %v1210
        %v1506 = vunpack.c.l.b16 %v1211
        %v1507 = vunpack.c.l.b16 %v1212
        %v1508 = vunpack.c.l.b16 %v1213
        %v1509 = vunpack.c.l.b16 %v1214
        %v1510 = vunpack.c.l.b16 %v1215
        %v1511 = vunpack.c.l.b16 %v1216
        %v1512 = vunpack.c.l.b16 %v1217
        %v1513 = vunpack.c.l.b16 %v1218
        %v1514 = vunpack.c.l.b16 %v1219
        %v1515 = vunpack.c.l.b16 %v1220
        %v1516 = vunpack.c.l.b16 %v1221
        %v1517 = vunpack.c.l.b16 %v1222
        %v1518 = vunpack.c.l.b16 %v1223
        %v1519 = vunpack.c.l.b16 %v1224
        %v1520 = vunpack.c.l.b16 %v1225
        %v1521 = vunpack.c.l.b16 %v1226
        %v1522 = vunpack.c.l.b16 %v1227
        %v1523 = vunpack.c.l.b16 %v1228
        %v1524 = vunpack.c.l.b16 %v1229
        %v1525 = vunpack.c.l.b16 %v1230
        %v1526 = vunpack.c.l.b16 %v1231
        %v1527 = vunpack.c.l.b16 %v1232
        %v1528 = vunpack.c.l.b16 %v1233
        %v1529 = vunpack.c.l.b16 %v1234
        %v1530 = vunpack.c.l.b16 %v1235
        %v1531 = vunpack.c.l.b16 %v1236
        %v1532 = vunpack.c.l.b16 %v1237
        %v1533 = vunpack.c.l.b16 %v1238
        %v1534 = vunpack.c.l.b16 %v1239
        %v1535 = vunpack.c.l.b16 %v1240
        %v1536 = vunpack.c.l.b16 %v1241
        %v1537 = vunpack.c.l.b16 %v1242
        %v1538 = vunpack.c.l.b16 %v1243
        %v1539 = vunpack.c.l.b16 %v1244
        %v1540 = vunpack.c.l.b16 %v1245
        %v1541 = vunpack.c.l.b16 %v1246
        %v1542 = vunpack.c.l.b16 %v1247
        %v1543 = vunpack.c.l.b16 %v1248
        %v1544 = vunpack.c.l.b16 %v1249
        %v1545 = vunpack.c.l.b16 %v1250
        %v1546 = vunpack.c.l.b16 %v1251
        %v1547 = vunpack.c.l.b16 %v1252
        %v1548 = vunpack.c.l.b16 %v1253
        %v1549 = vunpack.c.l.b16 %v1254
        %v1550 = vunpack.c.l.b16 %v1255
        %v1551 = vunpack.c.l.b16 %v1256
        %v1552 = vunpack.c.l.b16 %v1257
        %v1553 = vunpack.c.l.b16 %v1258
        %v1554 = vunpack.c.l.b16 %v1259
        %v1555 = vunpack.c.l.b16 %v1260
        %v1556 = vunpack.c.l.b16 %v1261
        %v1557 = vunpack.c.l.b16 %v1262
        %v1558 = vunpack.c.l.b16 %v1263
        %v1559 = vunpack.c.l.b16 %v1264
        %v1560 = vunpack.c.l.b16 %v1265
        %v1561 = vunpack.c.l.b16 %v1266
        %v1562 = vunpack.c.l.b16 %v1267
        %v1563 = vunpack.c.l.b16 %v1268
        %v1564 = vunpack.c.l.b16 %v1269
        %v1565 = vunpack.c.l.b16 %v1270
        %v1566 = vunpack.c.l.b16 %v1271
        %v1567 = vunpack.c.l.b16 %v1272
        %v1568 = vunpack.c.l.b16 %v1273
        %v1569 = vunpack.c.l.b16 %v1274
        %v1570 = vunpack.c.l.b16 %v1275
        %v1571 = vunpack.c.l.b16 %v1276
        %v1572 = vunpack.c.l.b16 %v1277
        %v1573 = vunpack.c.l.b16 %v1278
        %v1574 = vunpack.c.l.b16 %v1279
        %v1575 = vunpack.c.l.b16 %v1280
        %v1576 = vunpack.c.l.b16 %v1281
        %v1577 = vunpack.c.l.b16 %v1282
        %v1578 = vunpack.c.l.b16 %v1283
        %v1579 = vunpack.c.l.b16 %v1284
        %v1580 = vunpack.c.l.b16 %v1285
        %v1581 = vunpack.c.l.b16 %v1286
        %v1582 = vunpack.c.l.b16 %v1287
        %v1583 = vunpack.c.l.b16 %v1288
        %v1584 = vunpack.c.l.b16 %v1289
        %v1585 = vunpack.c.l.b16 %v1290
        %v1586 = vunpack.c.l.b16 %v1291
        %v1587 = vunpack.c.l.b16 %v1292
        %v1588 = vunpack.c.l.b16 %v1293
        %v1589 = vunpack.c.l.b16 %v1294
        %v1590 = vunpack.c.l.b16 %v1295
        %v1591 = vunpack.c.l.b16 %v1296
        %v1592 = vunpack.c.l.b16 %v1297
        %v1593 = vunpack.c.l.b16 %v1298
        %v1594 = vunpack.c.l.b16 %v1299
        %v1595 = vunpack.c.l.b16 %v1300
        %v1596 = vunpack.c.l.b16 %v1301
        %v1597 = vunpack.c.l.b16 %v1302
        %v1598 = vunpack.c.l.b16 %v1303
        %v1599 = vunpack.c.l.b16 %v1304
        %v1600 = vunpack.c.l.b16 %v1305
        %v1601 = vunpack.c.l.b16 %v1306
        %v1602 = vunpack.c.l.b16 %v1307
        %v1603 = vunpack.c.l.b16 %v1308
        %v1604 = vunpack.c.l.b16 %v1309
        %v1605 = vunpack.c.l.b16 %v1310
        %v1606 = vunpack.c.l.b16 %v1311
        %v1607 = vunpack.c.l.b16 %v1312
        %v1608 = vunpack.c.l.b16 %v1313
        %v1609 = vunpack.c.l.b16 %v1314
        %v1610 = vunpack.c.l.b16 %v1315
        %v1611 = vunpack.c.l.b16 %v1316
        %v1612 = vunpack.c.l.b16 %v1317
        %v1613 = vunpack.c.l.b16 %v1318
        %v1614 = vunpack.c.l.b16 %v1319
        %v1615 = vunpack.c.l.b16 %v1320
        %v1616 = vunpack.c.l.b16 %v1321
        %v1617 = vunpack.c.l.b16 %v1322
        %v1618 = vunpack.c.l.b16 %v1323
        %v1619 = vunpack.c.l.b16 %v1324
        %v1620 = vunpack.c.l.b16 %v1325
        %v1621 = vunpack.c.l.b16 %v1326
        %v1622 = vunpack.c.l.b16 %v1327
        %v1623 = vpack.c.b16 %v1480, %v1479
        %v1624 = vpack.c.b16 %v1482, %v1481
        %v1625 = vpack.c.b16 %v1484, %v1483
        %v1626 = vpack.c.b16 %v1486, %v1485
        %v1627 = vpack.c.b16 %v1488, %v1487
        %v1628 = vpack.c.b16 %v1490, %v1489
        %v1629 = vpack.c.b16 %v1492, %v1491
        %v1630 = vpack.c.b16 %v1494, %v1493
        %v1631 = vpack.c.b16 %v1496, %v1495
        %v1632 = vpack.c.b16 %v1498, %v1497
        %v1633 = vpack.c.b16 %v1500, %v1499
        %v1634 = vpack.c.b16 %v1502, %v1501
        %v1635 = vpack.c.b16 %v1504, %v1503
        %v1636 = vpack.c.b16 %v1506, %v1505
        %v1637 = vpack.c.b16 %v1508, %v1507
        %v1638 = vpack.c.b16 %v1510, %v1509
        %v1639 = vpack.c.b16 %v1512, %v1511
        %v1640 = vpack.c.b16 %v1514, %v1513
        %v1641 = vpack.c.b16 %v1516, %v1515
        %v1642 = vpack.c.b16 %v1518, %v1517
        %v1643 = vpack.c.b16 %v1520, %v1519
        %v1644 = vpack.c.b16 %v1522, %v1521
        %v1645 = vpack.c.b16 %v1524, %v1523
        %v1646 = vpack.c.b16 %v1526, %v1525
        %v1647 = vpack.c.b16 %v1528, %v1527
        %v1648 = vpack.c.b16 %v1530, %v1529
        %v1649 = vpack.c.b16 %v1532, %v1531
        %v1650 = vpack.c.b16 %v1534, %v1533
        %v1651 = vpack.c.b16 %v1536, %v1535
        %v1652 = vpack.c.b16 %v1538, %v1537
        %v1653 = vpack.c.b16 %v1540, %v1539
        %v1654 = vpack.c.b16 %v1542, %v1541
        %v1655 = vpack.c.b16 %v1544, %v1543
        %v1656 = vpack.c.b16 %v1546, %v1545
        %v1657 = vpack.c.b16 %v1548, %v1547
        %v1658 = vpack.c.b16 %v1550, %v1549
        %v1659 = vpack.c.b16 %v1552, %v1551
        %v1660 = vpack.c.b16 %v1554, %v1553
        %v1661 = vpack.c.b16 %v1556, %v1555
        %v1662 = vpack.c.b16 %v1558, %v1557
        %v1663 = vpack.c.b16 %v1560, %v1559
        %v1664 = vpack.c.b16 %v1562, %v1561
        %v1665 = vpack.c.b16 %v1564, %v1563
        %v1666 = vpack.c.b16 %v1566, %v1565
        %v1667 = vpack.c.b16 %v1568, %v1567
        %v1668 = vpack.c.b16 %v1570, %v1569
        %v1669 = vpack.c.b16 %v1572, %v1571
        %v1670 = vpack.c.b16 %v1574, %v1573
        %v1671 = vpack.c.b16 %v1576, %v1575
        %v1672 = vpack.c.b16 %v1578, %v1577
        %v1673 = vpack.c.b16 %v1580, %v1579
        %v1674 = vpack.c.b16 %v1582, %v1581
        %v1675 = vpack.c.b16 %v1584, %v1583
        %v1676 = vpack.c.b16 %v1586, %v1585
        %v1677 = vpack.c.b16 %v1588, %v1587
        %v1678 = vpack.c.b16 %v1590, %v1589
        %v1679 = vpack.c.b16 %v1592, %v1591
        %v1680 = vpack.c.b16 %v1594, %v1593
        %v1681 = vpack.c.b16 %v1596, %v1595
        %v1682 = vpack.c.b16 %v1598, %v1597
        %v1683 = vpack.c.b16 %v1600, %v1599
        %v1684 = vpack.c.b16 %v1602, %v1601
        %v1685 = vpack.c.b16 %v1604, %v1603
        %v1686 = vpack.c.b16 %v1606, %v1605
        %v1687 = vpack.c.b16 %v1608, %v1607
        %v1688 = vpack.c.b16 %v1610, %v1609
        %v1689 = vpack.c.b16 %v1612, %v1611
        %v1690 = vpack.c.b16 %v1614, %v1613
        %v1691 = vpack.c.b16 %v1616, %v1615
        %v1692 = vpack.c.b16 %v1618, %v1617
        %v1693 = vpack.c.b16 %v1620, %v1619
        %v1694 = vpack.c.b16 %v1622, %v1621
        %1767 = vmatprep.subr.bf16.mxu0 0
        %1768 = vmatpush1.bf16.msra.mxu0 %v1623
        %1769 = vmatprep.subr.bf16.mxu0 0
        %1770 = vmatpush1.bf16.msra.mxu0 %v1624
        %1771 = vmatprep.subr.bf16.mxu0 0
        %1772 = vmatpush1.bf16.msra.mxu0 %v1625
        %1773 = vmatprep.subr.bf16.mxu0 0
        %1774 = vmatpush1.bf16.msra.mxu0 %v1626
        %1775 = vmatprep.subr.bf16.mxu0 0
        %1776 = vmatpush1.bf16.msra.mxu0 %v1627
        %1777 = vmatprep.subr.bf16.mxu0 0
        %1778 = vmatpush1.bf16.msra.mxu0 %v1628
        %1779 = vmatprep.subr.bf16.mxu0 0
        %1780 = vmatpush1.bf16.msra.mxu0 %v1629
        %1781 = vmatprep.subr.bf16.mxu0 0
        %1782 = vmatpush1.bf16.msra.mxu0 %v1630
        %1783 = vmatprep.subr.bf16.mxu0 0
        %1784 = vmatpush1.bf16.msra.mxu0 %v1631
        %1785 = vmatprep.subr.bf16.mxu0 0
        %1786 = vmatpush1.bf16.msra.mxu0 %v1632
        %1787 = vmatprep.subr.bf16.mxu0 0
        %1788 = vmatpush1.bf16.msra.mxu0 %v1633
        %1789 = vmatprep.subr.bf16.mxu0 0
        %1790 = vmatpush1.bf16.msra.mxu0 %v1634
        %1791 = vmatprep.subr.bf16.mxu0 0
        %1792 = vmatpush1.bf16.msra.mxu0 %v1635
        %1793 = vmatprep.subr.bf16.mxu0 0
        %1794 = vmatpush1.bf16.msra.mxu0 %v1636
        %1795 = vmatprep.subr.bf16.mxu0 0
        %1796 = vmatpush1.bf16.msra.mxu0 %v1637
        %1797 = vmatprep.subr.bf16.mxu0 0
        %1798 = vmatpush1.bf16.msra.mxu0 %v1638
        %1799 = vmatprep.mubr.bf16.mxu0 %v1149
        %1800 = vmatmul.mubr.bf16.gmra.mrb[0].mxu0 %v1148
        %v1801 = vpop.f32.mrb[0].mxu0
        %v1802 = vadd.f32 %v1333, %v1801
        %v1803 = vpop.f32.mrb[0].mxu0
        %v1804 = vpop.f32.mrb[0].mxu0
        %v1805 = vadd.f32 %v1333, %v1804
        %v1806 = vpop.f32.mrb[0].mxu0
        %1807 = vmatprep.mubr.bf16.mxu0 %v1158
        %1808 = vmatmul.mubr.bf16.gmra.mrb[0].mxu0 %v1157
        %v1809 = vpop.f32.mrb[0].mxu0
        %v1810 = vadd.f32 %v1333, %v1809
        %v1811 = vpop.f32.mrb[0].mxu0
        %v1812 = vpop.f32.mrb[0].mxu0
        %v1813 = vadd.f32 %v1333, %v1812
        %v1814 = vpop.f32.mrb[0].mxu0
        %1815 = vmatprep.mubr.bf16.mxu0 %v1167
        %1816 = vmatmul.mubr.bf16.gmra.mrb[0].mxu0 %v1166
        %v1817 = vpop.f32.mrb[0].mxu0
        %v1818 = vadd.f32 %v1333, %v1817
        %v1819 = vpop.f32.mrb[0].mxu0
        %v1820 = vpop.f32.mrb[0].mxu0
        %v1821 = vadd.f32 %v1333, %v1820
        %v1822 = vpop.f32.mrb[0].mxu0
        %1823 = vmatprep.mubr.bf16.mxu0 %v1176
        %1824 = vmatmul.mubr.bf16.gmra.mrb[0].mxu0 %v1175
        %v1825 = vpop.f32.mrb[0].mxu0
        %v1826 = vadd.f32 %v1333, %v1825
        %v1827 = vpop.f32.mrb[0].mxu0
        %v1828 = vpop.f32.mrb[0].mxu0
        %v1829 = vadd.f32 %v1333, %v1828
        %v1830 = vpop.f32.mrb[0].mxu0
        %1831 = vdwg.mxu0
        %1832 = vmatprep.subr.bf16.mxu0 0
        %1833 = vmatpush1.bf16.msra.mxu0 %v1639
        %1834 = vmatprep.subr.bf16.mxu0 0
        %1835 = vmatpush1.bf16.msra.mxu0 %v1640
        %1836 = vmatprep.subr.bf16.mxu0 0
        %1837 = vmatpush1.bf16.msra.mxu0 %v1641
        %1838 = vmatprep.subr.bf16.mxu0 0
        %1839 = vmatpush1.bf16.msra.mxu0 %v1642
        %1840 = vmatprep.subr.bf16.mxu0 0
        %1841 = vmatpush1.bf16.msra.mxu0 %v1643
        %1842 = vmatprep.subr.bf16.mxu0 0
        %1843 = vmatpush1.bf16.msra.mxu0 %v1644
        %1844 = vmatprep.subr.bf16.mxu0 0
        %1845 = vmatpush1.bf16.msra.mxu0 %v1645
        %1846 = vmatprep.subr.bf16.mxu0 0
        %1847 = vmatpush1.bf16.msra.mxu0 %v1646
        %1848 = vmatprep.subr.bf16.mxu0 0
        %1849 = vmatpush1.bf16.msra.mxu0 %v1647
        %1850 = vmatprep.subr.bf16.mxu0 0
        %1851 = vmatpush1.bf16.msra.mxu0 %v1648
        %1852 = vmatprep.subr.bf16.mxu0 0
        %1853 = vmatpush1.bf16.msra.mxu0 %v1649
        %1854 = vmatprep.subr.bf16.mxu0 0
        %1855 = vmatpush1.bf16.msra.mxu0 %v1650
        %1856 = vmatprep.subr.bf16.mxu0 0
        %1857 = vmatpush1.bf16.msra.mxu0 %v1651
        %1858 = vmatprep.subr.bf16.mxu0 0
        %1859 = vmatpush1.bf16.msra.mxu0 %v1652
        %1860 = vmatprep.subr.bf16.mxu0 0
        %1861 = vmatpush1.bf16.msra.mxu0 %v1653
        %1862 = vmatprep.subr.bf16.mxu0 0
        %1863 = vmatpush1.bf16.msra.mxu0 %v1654
        %1864 = vmatprep.mubr.bf16.mxu0 %v1151
        %1865 = vmatmul.mubr.bf16.gmra.mrb[0].mxu0 %v1150
        %v1866 = vpop.f32.mrb[0].mxu0
        %v1867 = vadd.f32 %v1802, %v1866
        %v1868 = vpop.f32.mrb[0].mxu0
        %v1869 = vpop.f32.mrb[0].mxu0
        %v1870 = vadd.f32 %v1805, %v1869
        %v1871 = vpop.f32.mrb[0].mxu0
        %1872 = vmatprep.mubr.bf16.mxu0 %v1160
        %1873 = vmatmul.mubr.bf16.gmra.mrb[0].mxu0 %v1159
        %v1874 = vpop.f32.mrb[0].mxu0
        %v1875 = vadd.f32 %v1810, %v1874
        %v1876 = vpop.f32.mrb[0].mxu0
        %v1877 = vpop.f32.mrb[0].mxu0
        %v1878 = vadd.f32 %v1813, %v1877
        %v1879 = vpop.f32.mrb[0].mxu0
        %1880 = vmatprep.mubr.bf16.mxu0 %v1169
        %1881 = vmatmul.mubr.bf16.gmra.mrb[0].mxu0 %v1168
        %v1882 = vpop.f32.mrb[0].mxu0
        %v1883 = vadd.f32 %v1818, %v1882
        %v1884 = vpop.f32.mrb[0].mxu0
        %v1885 = vpop.f32.mrb[0].mxu0
        %v1886 = vadd.f32 %v1821, %v1885
        %v1887 = vpop.f32.mrb[0].mxu0
        %1888 = vmatprep.mubr.bf16.mxu0 %v1178
        %1889 = vmatmul.mubr.bf16.gmra.mrb[0].mxu0 %v1177
        %v1890 = vpop.f32.mrb[0].mxu0
        %v1891 = vadd.f32 %v1826, %v1890
        %v1892 = vpop.f32.mrb[0].mxu0
        %v1893 = vpop.f32.mrb[0].mxu0
        %v1894 = vadd.f32 %v1829, %v1893
        %v1895 = vpop.f32.mrb[0].mxu0
        %1896 = vdwg.mxu0
        %1897 = vmatprep.subr.bf16.mxu0 0
        %1898 = vmatpush1.bf16.msra.mxu0 %v1655
        %1899 = vmatprep.subr.bf16.mxu0 0
        %1900 = vmatpush1.bf16.msra.mxu0 %v1656
        %1901 = vmatprep.subr.bf16.mxu0 0
        %1902 = vmatpush1.bf16.msra.mxu0 %v1657
        %1903 = vmatprep.subr.bf16.mxu0 0
        %1904 = vmatpush1.bf16.msra.mxu0 %v1658
        %1905 = vmatprep.subr.bf16.mxu0 0
        %1906 = vmatpush1.bf16.msra.mxu0 %v1659
        %1907 = vmatprep.subr.bf16.mxu0 0
        %1908 = vmatpush1.bf16.msra.mxu0 %v1660
        %1909 = vmatprep.subr.bf16.mxu0 0
        %1910 = vmatpush1.bf16.msra.mxu0 %v1661
        %1911 = vmatprep.subr.bf16.mxu0 0
        %1912 = vmatpush1.bf16.msra.mxu0 %v1662
        %1913 = vmatprep.subr.bf16.mxu0 0
        %1914 = vmatpush1.bf16.msra.mxu0 %v1663
        %1915 = vmatprep.subr.bf16.mxu0 0
        %1916 = vmatpush1.bf16.msra.mxu0 %v1664
        %1917 = vmatprep.subr.bf16.mxu0 0
        %1918 = vmatpush1.bf16.msra.mxu0 %v1665
        %1919 = vmatprep.subr.bf16.mxu0 0
        %1920 = vmatpush1.bf16.msra.mxu0 %v1666
        %1921 = vmatprep.subr.bf16.mxu0 0
        %1922 = vmatpush1.bf16.msra.mxu0 %v1667
        %1923 = vmatprep.subr.bf16.mxu0 0
        %1924 = vmatpush1.bf16.msra.mxu0 %v1668
        %1925 = vmatprep.subr.bf16.mxu0 0
        %1926 = vmatpush1.bf16.msra.mxu0 %v1669
        %1927 = vmatprep.subr.bf16.mxu0 0
        %1928 = vmatpush1.bf16.msra.mxu0 %v1670
        %1929 = vmatprep.mubr.bf16.mxu0 %v1153
        %1930 = vmatmul.mubr.bf16.gmra.mrb[0].mxu0 %v1152
        %v1931 = vpop.f32.mrb[0].mxu0
        %v1932 = vadd.f32 %v1867, %v1931
        %v1933 = vpop.f32.mrb[0].mxu0
        %v1934 = vpop.f32.mrb[0].mxu0
        %v1935 = vadd.f32 %v1870, %v1934
        %v1936 = vpop.f32.mrb[0].mxu0
        %1937 = vmatprep.mubr.bf16.mxu0 %v1162
        %1938 = vmatmul.mubr.bf16.gmra.mrb[0].mxu0 %v1161
        %v1939 = vpop.f32.mrb[0].mxu0
        %v1940 = vadd.f32 %v1875, %v1939
        %v1941 = vpop.f32.mrb[0].mxu0
        %v1942 = vpop.f32.mrb[0].mxu0
        %v1943 = vadd.f32 %v1878, %v1942
        %v1944 = vpop.f32.mrb[0].mxu0
        %1945 = vmatprep.mubr.bf16.mxu0 %v1171
        %1946 = vmatmul.mubr.bf16.gmra.mrb[0].mxu0 %v1170
        %v1947 = vpop.f32.mrb[0].mxu0
        %v1948 = vadd.f32 %v1883, %v1947
        %v1949 = vpop.f32.mrb[0].mxu0
        %v1950 = vpop.f32.mrb[0].mxu0
        %v1951 = vadd.f32 %v1886, %v1950
        %v1952 = vpop.f32.mrb[0].mxu0
        %1953 = vmatprep.mubr.bf16.mxu0 %v1180
        %1954 = vmatmul.mubr.bf16.gmra.mrb[0].mxu0 %v1179
        %v1955 = vpop.f32.mrb[0].mxu0
        %v1956 = vadd.f32 %v1891, %v1955
        %v1957 = vpop.f32.mrb[0].mxu0
        %v1958 = vpop.f32.mrb[0].mxu0
        %v1959 = vadd.f32 %v1894, %v1958
        %v1960 = vpop.f32.mrb[0].mxu0
        %1961 = vdwg.mxu0
        %1962 = vmatprep.subr.bf16.mxu0 0
        %1963 = vmatpush1.bf16.msra.mxu0 %v1671
        %1964 = vmatprep.subr.bf16.mxu0 0
        %1965 = vmatpush1.bf16.msra.mxu0 %v1672
        %1966 = vmatprep.subr.bf16.mxu0 0
        %1967 = vmatpush1.bf16.msra.mxu0 %v1673
        %1968 = vmatprep.subr.bf16.mxu0 0
        %1969 = vmatpush1.bf16.msra.mxu0 %v1674
        %1970 = vmatprep.subr.bf16.mxu0 0
        %1971 = vmatpush1.bf16.msra.mxu0 %v1675
        %1972 = vmatprep.subr.bf16.mxu0 0
        %1973 = vmatpush1.bf16.msra.mxu0 %v1676
        %1974 = vmatprep.subr.bf16.mxu0 0
        %1975 = vmatpush1.bf16.msra.mxu0 %v1677
        %1976 = vmatprep.subr.bf16.mxu0 0
        %1977 = vmatpush1.bf16.msra.mxu0 %v1678
        %1978 = vmatprep.subr.bf16.mxu0 0
        %1979 = vmatpush1.bf16.msra.mxu0 %v1679
        %1980 = vmatprep.subr.bf16.mxu0 0
        %1981 = vmatpush1.bf16.msra.mxu0 %v1680
        %1982 = vmatprep.subr.bf16.mxu0 0
        %1983 = vmatpush1.bf16.msra.mxu0 %v1681
        %1984 = vmatprep.subr.bf16.mxu0 0
        %1985 = vmatpush1.bf16.msra.mxu0 %v1682
        %1986 = vmatprep.subr.bf16.mxu0 0
        %1987 = vmatpush1.bf16.msra.mxu0 %v1683
        %1988 = vmatprep.subr.bf16.mxu0 0
        %1989 = vmatpush1.bf16.msra.mxu0 %v1684
        %1990 = vmatprep.subr.bf16.mxu0 0
        %1991 = vmatpush1.bf16.msra.mxu0 %v1685
        %1992 = vmatprep.subr.bf16.mxu0 0
        %1993 = vmatpush1.bf16.msra.mxu0 %v1686
        %1994 = vmatprep.mubr.bf16.mxu0 %v1155
        %1995 = vmatmul.mubr.bf16.gmra.mrb[0].mxu0 %v1154
        %v1996 = vpop.f32.mrb[0].mxu0
        %v1997 = vadd.f32 %v1932, %v1996
        %v1998 = vpop.f32.mrb[0].mxu0
        %v1999 = vpop.f32.mrb[0].mxu0
        %v2000 = vadd.f32 %v1935, %v1999
        %v2001 = vpop.f32.mrb[0].mxu0
        %2002 = vmatprep.mubr.bf16.mxu0 %v1164
        %2003 = vmatmul.mubr.bf16.gmra.mrb[0].mxu0 %v1163
        %v2004 = vpop.f32.mrb[0].mxu0
        %v2005 = vadd.f32 %v1940, %v2004
        %v2006 = vpop.f32.mrb[0].mxu0
        %v2007 = vpop.f32.mrb[0].mxu0
        %v2008 = vadd.f32 %v1943, %v2007
        %v2009 = vpop.f32.mrb[0].mxu0
        %2010 = vmatprep.mubr.bf16.mxu0 %v1173
        %2011 = vmatmul.mubr.bf16.gmra.mrb[0].mxu0 %v1172
        %v2012 = vpop.f32.mrb[0].mxu0
        %v2013 = vadd.f32 %v1948, %v2012
        %v2014 = vpop.f32.mrb[0].mxu0
        %v2015 = vpop.f32.mrb[0].mxu0
        %v2016 = vadd.f32 %v1951, %v2015
        %v2017 = vpop.f32.mrb[0].mxu0
        %2018 = vmatprep.mubr.bf16.mxu0 %v1182
        %2019 = vmatmul.mubr.bf16.gmra.mrb[0].mxu0 %v1181
        %v2020 = vpop.f32.mrb[0].mxu0
        %v2021 = vadd.f32 %v1956, %v2020
        %v2022 = vpop.f32.mrb[0].mxu0
        %v2023 = vpop.f32.mrb[0].mxu0
        %v2024 = vadd.f32 %v1959, %v2023
        %v2025 = vpop.f32.mrb[0].mxu0
        %2026 = vdwg.mxu0
        %2027 = vmatprep.subr.bf16.mxu0 0
        %2028 = vmatpush1.bf16.msra.mxu0 %v1687
        %2029 = vmatprep.subr.bf16.mxu0 0
        %2030 = vmatpush1.bf16.msra.mxu0 %v1688
        %2031 = vmatprep.subr.bf16.mxu0 0
        %2032 = vmatpush1.bf16.msra.mxu0 %v1689
        %2033 = vmatprep.subr.bf16.mxu0 0
        %2034 = vmatpush1.bf16.msra.mxu0 %v1690
        %2035 = vmatprep.subr.bf16.mxu0 0
        %2036 = vmatpush1.bf16.msra.mxu0 %v1691
        %2037 = vmatprep.subr.bf16.mxu0 0
        %2038 = vmatpush1.bf16.msra.mxu0 %v1692
        %2039 = vmatprep.subr.bf16.mxu0 0
        %2040 = vmatpush1.bf16.msra.mxu0 %v1693
        %2041 = vmatprep.subr.bf16.mxu0 0
        %2042 = vmatpush1.bf16.msra.mxu0 %v1694
        %2043 = vmatprep.subr.bf16.mxu0 0
        %2044 = vmatpush1.bf16.msra.mxu0 0
        %2045 = vmatprep.subr.bf16.mxu0 0
        %2046 = vmatpush1.bf16.msra.mxu0 0
        %2047 = vmatprep.subr.bf16.mxu0 0
        %2048 = vmatpush1.bf16.msra.mxu0 0
        %2049 = vmatprep.subr.bf16.mxu0 0
        %2050 = vmatpush1.bf16.msra.mxu0 0
        %2051 = vmatprep.subr.bf16.mxu0 0
        %2052 = vmatpush1.bf16.msra.mxu0 0
        %2053 = vmatprep.subr.bf16.mxu0 0
        %2054 = vmatpush1.bf16.msra.mxu0 0
        %2055 = vmatprep.subr.bf16.mxu0 0
        %2056 = vmatpush1.bf16.msra.mxu0 0
        %2057 = vmatprep.subr.bf16.mxu0 0
        %2058 = vmatpush1.bf16.msra.mxu0 0
        %2059 = vmatprep.mubr.bf16.mxu0 0
        %2060 = vmatmul.mubr.bf16.gmra.mrb[0].mxu0 %v1156
        %v2061 = vpop.f32.mrb[0].mxu0
        %v2062 = vadd.f32 %v1997, %v2061
        %v2063 = vpop.f32.mrb[0].mxu0
        %v2064 = vpop.f32.mrb[0].mxu0
        %v2065 = vadd.f32 %v2000, %v2064
        %v2066 = vpop.f32.mrb[0].mxu0
        %2067 = vmatprep.mubr.bf16.mxu0 0
        %2068 = vmatmul.mubr.bf16.gmra.mrb[0].mxu0 %v1165
        %v2069 = vpop.f32.mrb[0].mxu0
        %v2070 = vadd.f32 %v2005, %v2069
        %v2071 = vpop.f32.mrb[0].mxu0
        %v2072 = vpop.f32.mrb[0].mxu0
        %v2073 = vadd.f32 %v2008, %v2072
        %v2074 = vpop.f32.mrb[0].mxu0
        %2075 = vmatprep.mubr.bf16.mxu0 0
        %2076 = vmatmul.mubr.bf16.gmra.mrb[0].mxu0 %v1174
        %v2077 = vpop.f32.mrb[0].mxu0
        %v2078 = vadd.f32 %v2013, %v2077
        %v2079 = vpop.f32.mrb[0].mxu0
        %v2080 = vpop.f32.mrb[0].mxu0
        %v2081 = vadd.f32 %v2016, %v2080
        %v2082 = vpop.f32.mrb[0].mxu0
        %2083 = vmatprep.mubr.bf16.mxu0 0
        %2084 = vmatmul.mubr.bf16.gmra.mrb[0].mxu0 %v1183
        %v2085 = vpop.f32.mrb[0].mxu0
        %v2086 = vadd.f32 %v2021, %v2085
        %v2087 = vpop.f32.mrb[0].mxu0
        %v2088 = vpop.f32.mrb[0].mxu0
        %v2089 = vadd.f32 %v2024, %v2088
        %v2090 = vpop.f32.mrb[0].mxu0
        %2091 = vdwg.mxu0
        %v2092 = vld [vmem:[%s312] sm:$0xff]
        %v2093 = vld [vmem:[%s312 + $0x10] sm:$0xff]
        %v2094 = vld [vmem:[%s312 + $0x20] sm:$0xff]
        %v2095 = vld [vmem:[%s312 + $0x30] sm:$0xff]
        %v2096 = vld [vmem:[%s312 + $0x40] sm:$0xff]
        %v2097 = vld [vmem:[%s312 + $0x50] sm:$0xff]
        %v2098 = vld [vmem:[%s312 + $0x60] sm:$0xff]
        %v2099 = vld [vmem:[%s312 + $0x70] sm:$0xff]
        %v2100 = vpack.c.bf16 %v2093, %v2092
        %v2101 = vpack.c.bf16 %v2095, %v2094
        %v2102 = vpack.c.bf16 %v2097, %v2096
        %v2103 = vpack.c.bf16 %v2099, %v2098
        %v2104 = vld [vmem:[%s5] sm:$0xf]
        %v2105 = vld [vmem:[%s5 + $0x4] sm:$0xf]
        %v2106 = vld [vmem:[%s5 + $0x8] sm:$0xf]
        %v2107 = vld [vmem:[%s5 + $0xc] sm:$0xf]
        %v2108 = vld [vmem:[%s5 + $0x10] sm:$0xf]
        %v2109 = vld [vmem:[%s5 + $0x14] sm:$0xf]
        %v2110 = vld [vmem:[%s5 + $0x18] sm:$0xf]
        %v2111 = vld [vmem:[%s5 + $0x1c] sm:$0xf]
        %v2112 = vld [vmem:[%s6] sm:$0x1]
        %v2114 = vlaneseq
        %v2115 = vshrl.u32 %v2114, 7
        %v2116 = vsub.s32 0, %v2115
        %v2117 = vrot.slane %v2112, %v2116
        %v2127 = vunpack.c.l.b16 %v2104
        %v2128 = vunpack.c.l.b16 %v2105
        %v2129 = vunpack.c.l.b16 %v2106
        %v2130 = vunpack.c.l.b16 %v2107
        %v2131 = vunpack.c.l.b16 %v2108
        %v2132 = vunpack.c.l.b16 %v2109
        %v2133 = vunpack.c.l.b16 %v2110
        %v2134 = vunpack.c.l.b16 %v2111
        %v2135 = vpack.c.b16 %v2128, %v2127
        %v2136 = vpack.c.b16 %v2130, %v2129
        %v2137 = vpack.c.b16 %v2132, %v2131
        %v2138 = vpack.c.b16 %v2134, %v2133
        %v2144 = vsel %vm483, %v2100, 0
        %v2147 = vsel %vm483, %v2101, 0
        %v2150 = vsel %vm483, %v2102, 0
        %v2153 = vsel %vm483, %v2103, 0
        %2155 = vmatprep.subr.bf16.mxu0 0
        %2156 = vmatpush1.bf16.msra.mxu0 %v2135
        %2157 = vmatprep.subr.bf16.mxu0 0
        %2158 = vmatpush1.bf16.msra.mxu0 %v2136
        %2159 = vmatprep.subr.bf16.mxu0 0
        %2160 = vmatpush1.bf16.msra.mxu0 %v2137
        %2161 = vmatprep.subr.bf16.mxu0 0
        %2162 = vmatpush1.bf16.msra.mxu0 %v2138
        %2163 = vmatprep.subr.bf16.mxu0 0
        %2164 = vmatpush1.bf16.msra.mxu0 0
        %2165 = vmatprep.subr.bf16.mxu0 0
        %2166 = vmatpush1.bf16.msra.mxu0 0
        %2167 = vmatprep.subr.bf16.mxu0 0
        %2168 = vmatpush1.bf16.msra.mxu0 0
        %2169 = vmatprep.subr.bf16.mxu0 0
        %2170 = vmatpush1.bf16.msra.mxu0 0
        %2171 = vmatprep.subr.bf16.mxu0 0
        %2172 = vmatpush1.bf16.msra.mxu0 0
        %2173 = vmatprep.subr.bf16.mxu0 0
        %2174 = vmatpush1.bf16.msra.mxu0 0
        %2175 = vmatprep.subr.bf16.mxu0 0
        %2176 = vmatpush1.bf16.msra.mxu0 0
        %2177 = vmatprep.subr.bf16.mxu0 0
        %2178 = vmatpush1.bf16.msra.mxu0 0
        %2179 = vmatprep.subr.bf16.mxu0 0
        %2180 = vmatpush1.bf16.msra.mxu0 0
        %2181 = vmatprep.subr.bf16.mxu0 0
        %2182 = vmatpush1.bf16.msra.mxu0 0
        %2183 = vmatprep.subr.bf16.mxu0 0
        %2184 = vmatpush1.bf16.msra.mxu0 0
        %2185 = vmatprep.subr.bf16.mxu0 0
        %2186 = vmatpush1.bf16.msra.mxu0 0
        %2187 = vmatprep.mubr.bf16.mxu0 0
        %2188 = vmatmul.mubr.bf16.gmra.mrb[0].mxu0 %v2144
        %v2189 = vpop.f32.mrb[0].mxu0
        %v2190 = vadd.f32 %v2117, %v2189
        %v2191 = vpop.f32.mrb[0].mxu0
        %v2192 = vpop.f32.mrb[0].mxu0
        %v2193 = vadd.f32 %v2117, %v2192
        %v2194 = vpop.f32.mrb[0].mxu0
        %2195 = vmatprep.mubr.bf16.mxu0 0
        %2196 = vmatmul.mubr.bf16.gmra.mrb[0].mxu0 %v2147
        %v2197 = vpop.f32.mrb[0].mxu0
        %v2198 = vadd.f32 %v2117, %v2197
        %v2199 = vpop.f32.mrb[0].mxu0
        %v2200 = vpop.f32.mrb[0].mxu0
        %v2201 = vadd.f32 %v2117, %v2200
        %v2202 = vpop.f32.mrb[0].mxu0
        %2203 = vmatprep.mubr.bf16.mxu0 0
        %2204 = vmatmul.mubr.bf16.gmra.mrb[0].mxu0 %v2150
        %v2205 = vpop.f32.mrb[0].mxu0
        %v2206 = vadd.f32 %v2117, %v2205
        %v2207 = vpop.f32.mrb[0].mxu0
        %v2208 = vpop.f32.mrb[0].mxu0
        %v2209 = vadd.f32 %v2117, %v2208
        %v2210 = vpop.f32.mrb[0].mxu0
        %2211 = vmatprep.mubr.bf16.mxu0 0
        %2212 = vmatmul.mubr.bf16.gmra.mrb[0].mxu0 %v2153
        %v2213 = vpop.f32.mrb[0].mxu0
        %v2214 = vadd.f32 %v2117, %v2213
        %v2215 = vpop.f32.mrb[0].mxu0
        %v2216 = vpop.f32.mrb[0].mxu0
        %v2217 = vadd.f32 %v2117, %v2216
        %v2218 = vpop.f32.mrb[0].mxu0
        %2219 = vdwg.mxu0
        %v2220 = vadd.f32 %v2062, %v2190
        %v2221 = vadd.f32 %v2065, %v2193
        %v2222 = vadd.f32 %v2070, %v2198
        %v2223 = vadd.f32 %v2073, %v2201
        %v2224 = vadd.f32 %v2078, %v2206
        %v2225 = vadd.f32 %v2081, %v2209
        %v2226 = vadd.f32 %v2086, %v2214
        %v2227 = vadd.f32 %v2089, %v2217
        %v2228 = vmax.f32 %v2220, 0.0
        %v2229 = vmax.f32 %v2221, 0.0
        %v2230 = vmax.f32 %v2222, 0.0
        %v2231 = vmax.f32 %v2223, 0.0
        %v2232 = vmax.f32 %v2224, 0.0
        %v2233 = vmax.f32 %v2225, 0.0
        %v2234 = vmax.f32 %v2226, 0.0
        %v2235 = vmax.f32 %v2227, 0.0
        %2236 = vst [vmem:[%s271] sm:$0xff] %v2228
        %2237 = vst [vmem:[%s271 + $0x8] sm:$0xff] %v2229
        %2238 = vst [vmem:[%s271 + $0x10] sm:$0xff] %v2230
        %2239 = vst [vmem:[%s271 + $0x18] sm:$0xff] %v2231
        %2240 = vst [vmem:[%s271 + $0x20] sm:$0xff] %v2232
        %2241 = vst [vmem:[%s271 + $0x28] sm:$0xff] %v2233
        %2242 = vst [vmem:[%s271 + $0x30] sm:$0xff] %v2234
        %2243 = vst [vmem:[%s271 + $0x38] sm:$0xff] %v2235
        %s2244 = sand.u32 %s181, 1
        %s2245 = scalar_lea.sflag [#allocation4], %s2244
        %s2246 = sand.u32 %s181, 1
        %s2247 = smul.addr %s2246, 64
        %s2248 = scalar_lea.vmem [#allocation3], %s2247
        // Predicated region
        $region49: #{_lambda_.1} parent=47 // pred_check
          %p2249 = pneg %p191
        $region50: #{_lambda_.1} parent=47 // pred_check_branch
          %2251 = sbr.rel (%p2249) target = $region52
        $region51: #{_lambda_.1} parent=47 // pred_region
          %s2253 = ssub.s32 1024, 1024
          %2254 = vsyncadd %s2245, %s2253
          %s2255 = smul.addr %s21, 8
          %s2256 = smul.addr %s2255, 128
          %s2257 = scalar_lea.hbm %s7, %s2256
          %s2258 = sshll.u32 %s2248, 4
          %s2259 = int_to_ptr.vmem [resolvable:$true] %s2258
          %2264 = dma.vmem_to_hbm [thread:$0]  %s2259, 1024, %s2257, %s2245, 128, 128, 8
        $region52: #{_lambda_.1} parent=47 // pred_fallthru
          _
      $region48: #{_lambda_.1} parent=5 // pred_fallthru
        _
      %p2265 = scmp.le.s32.totalorder 2, %s16
      // Predicated region
      $region53: #{_lambda_.1} parent=5 // pred_check
        %p2266 = pneg %p2265
      $region54: #{_lambda_.1} parent=5 // pred_check_branch
        %2268 = sbr.rel (%p2266) target = $region56
      $region55: #{_lambda_.1} parent=5 // pred_region
        %s2269 = ssub.s32 %s16, 2
        // Predicated region
        $region57: #{_lambda_.1} parent=55 // pred_check
          %p2270 = pneg %p197
        $region58: #{_lambda_.1} parent=55 // pred_check_branch
          %2272 = sbr.rel (%p2270) target = $region60
        $region59: #{_lambda_.1} parent=55 // pred_region
          %s2273 = sand.u32 %s182, 1
          %s2274 = scalar_lea.sflag [#allocation4], %s2273
          %s2275 = sand.u32 %s182, 1
          %s2276 = smul.addr %s2275, 64
          %s2277 = scalar_lea.vmem [#allocation3], %s2276
          %2278 = dma.done %s2274, 1024
        $region60: #{_lambda_.1} parent=55 // pred_fallthru
          _
      $region56: #{_lambda_.1} parent=5 // pred_fallthru
        _
    $region6: #{_lambda_.1} parent=1 // loop_footer
      %s20 = sadd.s32 1, %s16
    $region7: #{_lambda_.1} parent=1 // loop_footer_branch
      %15 = sbr.rel target = $region3
    $region8: #{_lambda_.1} parent=1 // loop_exit
      _
    %2279 = vsyncpa [#allocation4], 1
    %s2280 = scalar_lea.sflag [#allocation4], 1
    %2281 = vsyncpa %s2280, 1

</llo_original>
